<compile_context>
chip_gen: v7x
topology: tpu7x:2x2x1
jax: 0.10.0
libtpu: 0.0.40
codegen_flags: <defaults>
</compile_context>

<pallas_src>
import numpy as np
import jax
import jax.numpy as jnp
from jax.experimental import pallas as pl
from jax.experimental.pallas import tpu as pltpu


# ----------------------------- configuration --------------------------------
STATE_STACK = 4
OBS_DIM = 16
NB_ACTIONS = 8
BATCH = 8

OBS_ENCODER_ARC = [64, 16]
ACT_ENCODER_ARC = [16]
SHARED_ENCODER_ARC = [256, 128, 64]
OBS_DECODER_ARC = [16, 64]
ACT_DECODER_ARC = [16]
SHARED_DECODER_ARC = [64, 128, 256]
LATENT_DIM = 32

OBS_IN = STATE_STACK * OBS_DIM                         # 64
ENC_CAT = OBS_ENCODER_ARC[-1] + ACT_ENCODER_ARC[-1]    # 32
DEC_CAT = OBS_DECODER_ARC[0] + ACT_DECODER_ARC[0]      # 32

# -------- fused layer plan (after head fusion / 256-lane split / widening) ----
# (name, fan_in, fan_out) -- all fan_out <= 128 so the slab is 128 lanes wide.
FUSED_LAYERS = [
    ("obs_enc0",   OBS_IN, 64),                  # 0
    ("obs_enc1w",  64, 32),                      # 1  cols 0:16 real, 16:32 zero
    ("act_enc0w",  1, 32),                       # 2  cols 0:16 zero, 16:32 real (VPU)
    ("sh_enc0_a",  ENC_CAT, 128),                # 3  sh_enc0 cols   0:128
    ("sh_enc0_b",  ENC_CAT, 128),                # 4  sh_enc0 cols 128:256
    ("sh_enc1_a",  128, 128),                    # 5  sh_enc1 rows   0:128 (+bias)
    ("sh_enc1_b",  128, 128),                    # 6  sh_enc1 rows 128:256 (bias=0)
    ("sh_enc2",    128, 64),                     # 7
    ("mu_logvar",  64, 2 * LATENT_DIM),          # 8  fused mu | log_var
    ("sh_dec0",    LATENT_DIM, 64),              # 9
    ("sh_dec1",    64, 128),                     # 10
    ("sh_dec2_a",  128, 128),                    # 11 sh_dec2 cols   0:128
    ("sh_dec2_b",  128, 128),                    # 12 sh_dec2 cols 128:256
    ("sh_dec3_a",  128, DEC_CAT),                # 13 sh_dec3 rows   0:128 (+bias)
    ("sh_dec3_b",  128, DEC_CAT),                # 14 sh_dec3 rows 128:256 (bias=0)
    ("dec_heads",  DEC_CAT, 64 + NB_ACTIONS),    # 15 block-diag obs_dec0 | act_dec
    ("obs_dec1w",  64 + NB_ACTIONS, 64 + NB_ACTIONS),  # 16 obs_dec1 + identity pass-through
]


def _round_up(x, m):
    return (x + m - 1) // m * m


SLAB_LANES = 128
_W_ROW_OFFSETS = []
_off = 0
for (_, _fi, _fo) in FUSED_LAYERS:
    _W_ROW_OFFSETS.append(_off)
    _off += _round_up(_fi, 8)                   # 8-aligned row starts (sublane tiles)
W_SLAB_ROWS = _round_up(_off, 8)
B_ROW_BASE = W_SLAB_ROWS                        # biases live below the weights
B_ROWS_PAD = _round_up(len(FUSED_LAYERS), 8)    # 24
SLAB_ROWS = W_SLAB_ROWS + B_ROWS_PAD

# lane-dense INPUT layout (one (B, 128) slab)
IN_OBS = (0, OBS_IN)                            # [0, 64)
IN_ACT = (OBS_IN, OBS_IN + 32)                  # [64, 96)  act broadcast over 32 lanes
IN_EPS = (OBS_IN + 32, OBS_IN + 64)             # [96, 128)
IN_W = 128

# lane-dense OUTPUT layout, vreg-boundary aligned
OUT_OBS = (0, OBS_IN)                           # [0, 64)
OUT_ACT = (OBS_IN, OBS_IN + NB_ACTIONS)         # [64, 72)
OUT_MU = (128, 128 + LATENT_DIM)                # [128, 160)
OUT_LV = (128 + LATENT_DIM, 128 + 2 * LATENT_DIM)  # [160, 192)
OUT_W = 256


# ------------------------------ kernel ---------------------------------------
def vae_forward_kernel(in_ref, w_ref, out_ref):
    """Whole VAE forward for one batch block; params come from one packed slab."""

    # One-shot load of all fused bias rows (3 vregs), sliced statically below.
    biases = w_ref[B_ROW_BASE:B_ROW_BASE + B_ROWS_PAD, :]   # (24, 128)

    def wmat(i):
        _, fi, fo = FUSED_LAYERS[i]
        off = _W_ROW_OFFSETS[i]
        return w_ref[off:off + fi, :fo]                      # (fi, fo)

    def bias(i):
        _, _, fo = FUSED_LAYERS[i]
        return biases[i:i + 1, :fo]                          # (1, fo)

    def lin(x, i):
        return jnp.dot(x, wmat(i), preferred_element_type=jnp.float32) + bias(i)

    def lin2(xa, xb, ia, ib):
        # split-K layer: fan_in=256 expressed as two 128-row blocks.
        return (jnp.dot(xa, wmat(ia), preferred_element_type=jnp.float32)
                + jnp.dot(xb, wmat(ib), preferred_element_type=jnp.float32)
                + bias(ia))

    relu = lambda v: jnp.maximum(v, 0.0)

    xin = in_ref[...]                          # (B, 128)
    obs = xin[:, IN_OBS[0]:IN_OBS[1]]          # (B, 64)
    act32 = xin[:, IN_ACT[0]:IN_ACT[1]]        # (B, 32)  act pre-broadcast to 32 lanes
    eps = xin[:, IN_EPS[0]:IN_EPS[1]]          # (B, 32)
    B = obs.shape[0]

    # ---- obs_encoder: Flatten + Base(state_stack, obs_dim, [64, 16]) ----
    x = relu(lin(obs, 0))                      # (B, 64)
    x32 = relu(lin(x, 1))                      # (B, 32): obs feats in lanes 0:16, zeros 16:32

    # ---- act_encoder: Linear(1,16)+ReLU on the VPU (lanes 16:32, zeros 0:16) ----
    y32 = relu(act32 * wmat(2) + bias(2))      # (B, 32)

    # ---- concat via elementwise add (disjoint non-zero lanes) ----
    z = x32 + y32                              # (B, 32) == concat([x, y], -1)

    # ---- shared_encoder: Base(1, 32, [256, 128, 64]) with the 256 kept split ----
    za = relu(lin(z, 3))                       # (B, 128)  first  half of the 256
    zb = relu(lin(z, 4))                       # (B, 128)  second half of the 256
    z = relu(lin2(za, zb, 5, 6))               # (B, 128)
    z = relu(lin(z, 7))                        # (B, 64)

    # ---- fused mu / log_var heads: one (64,64) matmul ----
    ml = lin(z, 8)                             # (B, 64): mu | log_var
    mu = ml[:, :LATENT_DIM]
    log_var = ml[:, LATENT_DIM:]

    # ---- reparameterize: eps * exp(0.5 * log_var) + mu ----
    zz = eps * jnp.exp(0.5 * log_var) + mu     # (B, 32)

    # ---- shared_decoder: Linear(32,64)+ReLU, InverseBase(1,32,[64,128,256]) ----
    d = relu(lin(zz, 9))                       # (B, 64)
    d = relu(lin(d, 10))                       # (B, 128)
    da = relu(lin(d, 11))                      # (B, 128)  first  half of the 256
    db = relu(lin(d, 12))                      # (B, 128)  second half of the 256
    d = relu(lin2(da, db, 13, 14))             # (B, 32)

    # ---- fused decoder heads: obs_dec layer0 (16->64) | act_dec (16->8) ----
    o1 = relu(lin(d, 15))                      # (B, 72): obs hidden | recons_act

    # ---- obs_decoder final layer widened with an identity block so the output
    #      already has recons_obs | recons_act in final lane order ----
    out72 = relu(lin(o1, 16))                  # (B, 72)

    # ---- two unmasked, vreg-aligned 128-lane stores ----
    out_ref[:, :128] = jnp.concatenate(
        [out72, jnp.zeros((B, 128 - out72.shape[1]), jnp.float32)], axis=-1)
    out_ref[:, 128:] = jnp.concatenate(
        [ml, jnp.zeros((B, 128 - ml.shape[1]), jnp.float32)], axis=-1)


# --------------------------- parameter init ----------------------------------
def init_params(key):
    """Deterministic synthetic weights for the 15 Linear layers (W: (in,out), b: (1,out))."""
    layer_dims = [
        # obs_encoder (Base(state_stack, obs_dim, [64,16]))
        (OBS_IN, OBS_ENCODER_ARC[0]),
        (OBS_ENCODER_ARC[0], OBS_ENCODER_ARC[1]),
        # act_encoder (Base(1, 1, [16]))
        (1, ACT_ENCODER_ARC[0]),
        # shared_encoder (Base(1, 32, [256,128,64]))
        (ENC_CAT, SHARED_ENCODER_ARC[0]),
        (SHARED_ENCODER_ARC[0], SHARED_ENCODER_ARC[1]),
        (SHARED_ENCODER_ARC[1], SHARED_ENCODER_ARC[2]),
        # mu / log_var
        (SHARED_ENCODER_ARC[-1], LATENT_DIM),
        (SHARED_ENCODER_ARC[-1], LATENT_DIM),
        # shared_decoder: Linear(latent, 64) then InverseBase(1, 32, [64,128,256])
        (LATENT_DIM, SHARED_DECODER_ARC[0]),
        (SHARED_DECODER_ARC[0], SHARED_DECODER_ARC[1]),
        (SHARED_DECODER_ARC[1], SHARED_DECODER_ARC[2]),
        (SHARED_DECODER_ARC[2], DEC_CAT),
        # obs_decoder: InverseBase(state_stack, obs_dim, [16, 64])
        (OBS_DECODER_ARC[0], OBS_DECODER_ARC[1]),
        (OBS_DECODER_ARC[1], OBS_IN),
        # act_decoder: InverseBase(1, nb_actions, [16])
        (ACT_DECODER_ARC[0], NB_ACTIONS),
    ]
    params = []
    keys = jax.random.split(key, len(layer_dims))
    for k, (fan_in, fan_out) in zip(keys, layer_dims):
        w = (jax.random.normal(k, (fan_in, fan_out), dtype=jnp.float32)
             * (1.0 / jnp.sqrt(jnp.float32(fan_in))))
        b = jnp.zeros((1, fan_out), dtype=jnp.float32)
        params.append(w)
        params.append(b)
    return params


def pack_params(params):
    """Pack the 15 (W, b) pairs into ONE 128-lane (SLAB_ROWS, 128) f32 slab (host-side, once)."""
    def W(i):
        return np.asarray(params[2 * i], dtype=np.float32)

    def b(i):
        return np.asarray(params[2 * i + 1], dtype=np.float32).reshape(-1)

    # obs_encoder L1 widened to 32 output lanes (zeros in 16:32).
    w_obs_enc1 = np.zeros((64, 32), np.float32)
    w_obs_enc1[:, :16] = W(1)
    b_obs_enc1 = np.zeros(32, np.float32)
    b_obs_enc1[:16] = b(1)

    # act_encoder placed at lanes 16:32 (zeros in 0:16).
    w_act_enc0 = np.zeros((1, 32), np.float32)
    w_act_enc0[:, 16:] = W(2)
    b_act_enc0 = np.zeros(32, np.float32)
    b_act_enc0[16:] = b(2)

    # block-diagonal fusion of obs_decoder layer 0 and act_decoder.
    w_heads = np.zeros((DEC_CAT, 64 + NB_ACTIONS), np.float32)
    w_heads[:OBS_DECODER_ARC[0], :64] = W(12)                         # (16, 64)
    w_heads[OBS_DECODER_ARC[0]:, 64:] = W(14)                         # (16, 8)
    b_heads = np.concatenate([b(12), b(14)])

    # obs_decoder final layer widened to (72, 72): identity block passes
    # recons_act (already >= 0) through untouched into lanes 64:72.
    w_obs_dec1 = np.zeros((64 + NB_ACTIONS, 64 + NB_ACTIONS), np.float32)
    w_obs_dec1[:64, :64] = W(13)
    w_obs_dec1[64:, 64:] = np.eye(NB_ACTIONS, dtype=np.float32)
    b_obs_dec1 = np.zeros(64 + NB_ACTIONS, np.float32)
    b_obs_dec1[:64] = b(13)

    fused = [
        (W(0), b(0)),                                                 # 0
        (w_obs_enc1, b_obs_enc1),                                     # 1
        (w_act_enc0, b_act_enc0),                                     # 2
        (W(3)[:, :128], b(3)[:128]),                                  # 3
        (W(3)[:, 128:], b(3)[128:]),                                  # 4
        (W(4)[:128, :], b(4)),                                        # 5
        (W(4)[128:, :], np.zeros(128, np.float32)),                   # 6
        (W(5), b(5)),                                                 # 7
        (np.concatenate([W(6), W(7)], axis=1),                        # 8  mu | log_var
         np.concatenate([b(6), b(7)])),
        (W(8), b(8)),                                                 # 9
        (W(9), b(9)),                                                 # 10
        (W(10)[:, :128], b(10)[:128]),                                # 11
        (W(10)[:, 128:], b(10)[128:]),                                # 12
        (W(11)[:128, :], b(11)),                                      # 13
        (W(11)[128:, :], np.zeros(DEC_CAT, np.float32)),              # 14
        (w_heads, b_heads),                                           # 15
        (w_obs_dec1, b_obs_dec1),                                     # 16
    ]

    slab = np.zeros((SLAB_ROWS, SLAB_LANES), np.float32)
    for idx, ((name, fi, fo), (w, bb)) in enumerate(zip(FUSED_LAYERS, fused)):
        assert w.shape == (fi, fo), (name, w.shape, (fi, fo))
        assert bb.shape == (fo,), (name, bb.shape, fo)
        off = _W_ROW_OFFSETS[idx]
        slab[off:off + fi, :fo] = w
        slab[B_ROW_BASE + idx, :fo] = bb
    return jnp.asarray(slab)


# ------------------------------- wrapper --------------------------------------
@jax.jit
def vae_forward(obs, act, eps, w_slab):
    """obs: (B, state_stack, obs_dim), act: (B, 1), eps: (B, latent_dim)."""
    B = obs.shape[0]
    obs_flat = obs.reshape(B, -1).astype(jnp.float32)                 # nn.Flatten
    act32 = jnp.broadcast_to(act.reshape(B, 1).astype(jnp.float32),
                             (B, IN_ACT[1] - IN_ACT[0]))
    eps_f = eps.astype(jnp.float32)
    # one lane-dense input slab -> one activation DMA
    in_slab = jnp.concatenate([obs_flat, act32, eps_f], axis=-1)      # (B, 128)

    vmem = pltpu.MemorySpace.VMEM
    # TODO(synk): if batch ever grows past ~128, add a batch grid with
    # dimension_semantics=("parallel",) and a constant index_map for w_slab so
    # v7x's second TensorCore is used and the slab stays VMEM-resident.
    out = pl.pallas_call(
        vae_forward_kernel,
        out_shape=jax.ShapeDtypeStruct((B, OUT_W), jnp.float32),
        in_specs=[pl.BlockSpec(memory_space=vmem)] * 2,
        out_specs=pl.BlockSpec(memory_space=vmem),
    )(in_slab, w_slab)

    recons_obs = out[:, OUT_OBS[0]:OUT_OBS[1]]
    recons_act = out[:, OUT_ACT[0]:OUT_ACT[1]]
    mu = out[:, OUT_MU[0]:OUT_MU[1]]
    log_var = out[:, OUT_LV[0]:OUT_LV[1]]
    # Matches PyTorch: [decode(z), (obs, act), mu, log_var]
    return (recons_obs, recons_act), (obs, act), mu, log_var


# ------------------------- pure-JAX reference ---------------------------------
def vae_forward_ref(obs, act, eps, params):
    """Un-fused reference on the original 15-layer parameter list."""
    def lin(x, i):
        return x @ params[2 * i] + params[2 * i + 1]

    relu = lambda v: jnp.maximum(v, 0.0)
    B = obs.shape[0]
    o = obs.reshape(B, -1)
    a = act.reshape(B, -1)
    x = relu(lin(relu(lin(o, 0)), 1))
    y = relu(lin(a, 2))
    z = jnp.concatenate([x, y], axis=-1)
    z = relu(lin(relu(lin(relu(lin(z, 3)), 4)), 5))
    mu = lin(z, 6)
    log_var = lin(z, 7)
    zz = eps * jnp.exp(0.5 * log_var) + mu
    d = relu(lin(relu(lin(relu(lin(relu(lin(zz, 8)), 9)), 10)), 11))
    ro = relu(lin(relu(lin(d[:, :OBS_DECODER_ARC[0]], 12)), 13))
    ra = relu(lin(d[:, DEC_CAT - ACT_DECODER_ARC[0]:], 14))
    return ro, ra, mu, log_var


# --------------------------------- main ---------------------------------------
if __name__ == "__main__":
    key = jax.random.PRNGKey(0)
    k_param, k_obs, k_act, k_eps = jax.random.split(key, 4)

    params = init_params(k_param)
    w_slab = pack_params(params)

    obs = jax.random.normal(k_obs, (BATCH, STATE_STACK, OBS_DIM), dtype=jnp.float32)
    act = jax.random.randint(k_act, (BATCH, 1), 0, NB_ACTIONS).astype(jnp.float32)
    eps = jax.random.normal(k_eps, (BATCH, LATENT_DIM), dtype=jnp.float32)

    (recons_obs, recons_act), _, mu, log_var = vae_forward(obs, act, eps, w_slab)
    jax.block_until_ready((recons_obs, recons_act, mu, log_var))

    ref_ro, ref_ra, ref_mu, ref_lv = vae_forward_ref(obs, act, eps, params)
    assert jnp.allclose(recons_obs, ref_ro, atol=1e-4, rtol=1e-4)
    assert jnp.allclose(recons_act, ref_ra, atol=1e-4, rtol=1e-4)
    assert jnp.allclose(mu, ref_mu, atol=1e-4, rtol=1e-4)
    assert jnp.allclose(log_var, ref_lv, atol=1e-4, rtol=1e-4)

    print("KERNEL_OK")
</pallas_src>

<mosaic_0001>
module attributes {stable_mosaic.version = 11 : i64} {
  func.func @vae_forward_kernel(%arg0: memref<8x128xf32, #tpu.memory_space<vmem>>, %arg1: memref<1384x128xf32, #tpu.memory_space<vmem>>, %arg2: memref<8x256xf32, #tpu.memory_space<vmem>>) attributes {dimension_semantics = [], scalar_prefetch = 0 : i64, scratch_operands = 0 : i64, tpu.core_type = #tpu.core_type<tc>} {
    %c1360 = arith.constant 1360 : index
    %c0 = arith.constant 0 : index
    %0 = vector.load %arg1[%c1360, %c0] : memref<1384x128xf32, #tpu.memory_space<vmem>>, vector<24x128xf32>
    %c0_0 = arith.constant 0 : index
    %c0_1 = arith.constant 0 : index
    %1 = vector.load %arg0[%c0_0, %c0_1] : memref<8x128xf32, #tpu.memory_space<vmem>>, vector<8x128xf32>
    %2 = vector.extract_strided_slice %1 {offsets = [0, 0], sizes = [8, 64], strides = [1, 1]} : vector<8x128xf32> to vector<8x64xf32>
    %3 = vector.extract_strided_slice %1 {offsets = [0, 64], sizes = [8, 32], strides = [1, 1]} : vector<8x128xf32> to vector<8x32xf32>
    %4 = vector.extract_strided_slice %1 {offsets = [0, 96], sizes = [8, 32], strides = [1, 1]} : vector<8x128xf32> to vector<8x32xf32>
    %c0_2 = arith.constant 0 : index
    %c0_3 = arith.constant 0 : index
    %5 = vector.load %arg1[%c0_2, %c0_3] : memref<1384x128xf32, #tpu.memory_space<vmem>>, vector<64x64xf32>
    %cst = arith.constant dense<0.000000e+00> : vector<8x64xf32>
    %6 = tpu.matmul %2, %5, %cst {dimension_numbers = #tpu.dot_dimension_numbers<[1], [0], [0], [1], [0, 0, 1, 1], [], []>} : vector<8x64xf32>, vector<64x64xf32>, vector<8x64xf32> -> vector<8x64xf32>
    %7 = vector.extract_strided_slice %0 {offsets = [0, 0], sizes = [1, 64], strides = [1, 1]} : vector<24x128xf32> to vector<1x64xf32>
    %8 = vector.broadcast %7 : vector<1x64xf32> to vector<8x64xf32>
    %9 = arith.addf %6, %8 : vector<8x64xf32>
    %cst_4 = arith.constant 0.000000e+00 : f32
    %10 = vector.broadcast %cst_4 : f32 to vector<8x64xf32>
    %11 = arith.maximumf %9, %10 : vector<8x64xf32>
    %c64 = arith.constant 64 : index
    %c0_5 = arith.constant 0 : index
    %12 = vector.load %arg1[%c64, %c0_5] : memref<1384x128xf32, #tpu.memory_space<vmem>>, vector<64x32xf32>
    %cst_6 = arith.constant dense<0.000000e+00> : vector<8x32xf32>
    %13 = tpu.matmul %11, %12, %cst_6 {dimension_numbers = #tpu.dot_dimension_numbers<[1], [0], [0], [1], [0, 0, 1, 1], [], []>} : vector<8x64xf32>, vector<64x32xf32>, vector<8x32xf32> -> vector<8x32xf32>
    %14 = vector.extract_strided_slice %0 {offsets = [1, 0], sizes = [1, 32], strides = [1, 1]} : vector<24x128xf32> to vector<1x32xf32>
    %15 = vector.broadcast %14 : vector<1x32xf32> to vector<8x32xf32>
    %16 = arith.addf %13, %15 : vector<8x32xf32>
    %cst_7 = arith.constant 0.000000e+00 : f32
    %17 = vector.broadcast %cst_7 : f32 to vector<8x32xf32>
    %18 = arith.maximumf %16, %17 : vector<8x32xf32>
    %c128 = arith.constant 128 : index
    %c0_8 = arith.constant 0 : index
    %19 = vector.load %arg1[%c128, %c0_8] : memref<1384x128xf32, #tpu.memory_space<vmem>>, vector<1x32xf32>
    %20 = vector.broadcast %19 : vector<1x32xf32> to vector<8x32xf32>
    %21 = arith.mulf %3, %20 : vector<8x32xf32>
    %22 = vector.extract_strided_slice %0 {offsets = [2, 0], sizes = [1, 32], strides = [1, 1]} : vector<24x128xf32> to vector<1x32xf32>
    %23 = vector.broadcast %22 : vector<1x32xf32> to vector<8x32xf32>
    %24 = arith.addf %21, %23 : vector<8x32xf32>
    %cst_9 = arith.constant 0.000000e+00 : f32
    %25 = vector.broadcast %cst_9 : f32 to vector<8x32xf32>
    %26 = arith.maximumf %24, %25 : vector<8x32xf32>
    %27 = arith.addf %18, %26 : vector<8x32xf32>
    %c136 = arith.constant 136 : index
    %c0_10 = arith.constant 0 : index
    %28 = vector.load %arg1[%c136, %c0_10] : memref<1384x128xf32, #tpu.memory_space<vmem>>, vector<32x128xf32>
    %cst_11 = arith.constant dense<0.000000e+00> : vector<8x128xf32>
    %29 = tpu.matmul %27, %28, %cst_11 {dimension_numbers = #tpu.dot_dimension_numbers<[1], [0], [0], [1], [0, 0, 1, 1], [], []>} : vector<8x32xf32>, vector<32x128xf32>, vector<8x128xf32> -> vector<8x128xf32>
    %30 = vector.extract_strided_slice %0 {offsets = [3, 0], sizes = [1, 128], strides = [1, 1]} : vector<24x128xf32> to vector<1x128xf32>
    %31 = vector.broadcast %30 : vector<1x128xf32> to vector<8x128xf32>
    %32 = arith.addf %29, %31 : vector<8x128xf32>
    %cst_12 = arith.constant 0.000000e+00 : f32
    %33 = vector.broadcast %cst_12 : f32 to vector<8x128xf32>
    %34 = arith.maximumf %32, %33 : vector<8x128xf32>
    %c168 = arith.constant 168 : index
    %c0_13 = arith.constant 0 : index
    %35 = vector.load %arg1[%c168, %c0_13] : memref<1384x128xf32, #tpu.memory_space<vmem>>, vector<32x128xf32>
    %cst_14 = arith.constant dense<0.000000e+00> : vector<8x128xf32>
    %36 = tpu.matmul %27, %35, %cst_14 {dimension_numbers = #tpu.dot_dimension_numbers<[1], [0], [0], [1], [0, 0, 1, 1], [], []>} : vector<8x32xf32>, vector<32x128xf32>, vector<8x128xf32> -> vector<8x128xf32>
    %37 = vector.extract_strided_slice %0 {offsets = [4, 0], sizes = [1, 128], strides = [1, 1]} : vector<24x128xf32> to vector<1x128xf32>
    %38 = vector.broadcast %37 : vector<1x128xf32> to vector<8x128xf32>
    %39 = arith.addf %36, %38 : vector<8x128xf32>
    %cst_15 = arith.constant 0.000000e+00 : f32
    %40 = vector.broadcast %cst_15 : f32 to vector<8x128xf32>
    %41 = arith.maximumf %39, %40 : vector<8x128xf32>
    %c200 = arith.constant 200 : index
    %c0_16 = arith.constant 0 : index
    %42 = vector.load %arg1[%c200, %c0_16] : memref<1384x128xf32, #tpu.memory_space<vmem>>, vector<128x128xf32>
    %cst_17 = arith.constant dense<0.000000e+00> : vector<8x128xf32>
    %43 = tpu.matmul %34, %42, %cst_17 {dimension_numbers = #tpu.dot_dimension_numbers<[1], [0], [0], [1], [0, 0, 1, 1], [], []>} : vector<8x128xf32>, vector<128x128xf32>, vector<8x128xf32> -> vector<8x128xf32>
    %c328 = arith.constant 328 : index
    %c0_18 = arith.constant 0 : index
    %44 = vector.load %arg1[%c328, %c0_18] : memref<1384x128xf32, #tpu.memory_space<vmem>>, vector<128x128xf32>
    %cst_19 = arith.constant dense<0.000000e+00> : vector<8x128xf32>
    %45 = tpu.matmul %41, %44, %cst_19 {dimension_numbers = #tpu.dot_dimension_numbers<[1], [0], [0], [1], [0, 0, 1, 1], [], []>} : vector<8x128xf32>, vector<128x128xf32>, vector<8x128xf32> -> vector<8x128xf32>
    %46 = arith.addf %43, %45 : vector<8x128xf32>
    %47 = vector.extract_strided_slice %0 {offsets = [5, 0], sizes = [1, 128], strides = [1, 1]} : vector<24x128xf32> to vector<1x128xf32>
    %48 = vector.broadcast %47 : vector<1x128xf32> to vector<8x128xf32>
    %49 = arith.addf %46, %48 : vector<8x128xf32>
    %cst_20 = arith.constant 0.000000e+00 : f32
    %50 = vector.broadcast %cst_20 : f32 to vector<8x128xf32>
    %51 = arith.maximumf %49, %50 : vector<8x128xf32>
    %c456 = arith.constant 456 : index
    %c0_21 = arith.constant 0 : index
    %52 = vector.load %arg1[%c456, %c0_21] : memref<1384x128xf32, #tpu.memory_space<vmem>>, vector<128x64xf32>
    %cst_22 = arith.constant dense<0.000000e+00> : vector<8x64xf32>
    %53 = tpu.matmul %51, %52, %cst_22 {dimension_numbers = #tpu.dot_dimension_numbers<[1], [0], [0], [1], [0, 0, 1, 1], [], []>} : vector<8x128xf32>, vector<128x64xf32>, vector<8x64xf32> -> vector<8x64xf32>
    %54 = vector.extract_strided_slice %0 {offsets = [7, 0], sizes = [1, 64], strides = [1, 1]} : vector<24x128xf32> to vector<1x64xf32>
    %55 = vector.broadcast %54 : vector<1x64xf32> to vector<8x64xf32>
    %56 = arith.addf %53, %55 : vector<8x64xf32>
    %cst_23 = arith.constant 0.000000e+00 : f32
    %57 = vector.broadcast %cst_23 : f32 to vector<8x64xf32>
    %58 = arith.maximumf %56, %57 : vector<8x64xf32>
    %c584 = arith.constant 584 : index
    %c0_24 = arith.constant 0 : index
    %59 = vector.load %arg1[%c584, %c0_24] : memref<1384x128xf32, #tpu.memory_space<vmem>>, vector<64x64xf32>
    %cst_25 = arith.constant dense<0.000000e+00> : vector<8x64xf32>
    %60 = tpu.matmul %58, %59, %cst_25 {dimension_numbers = #tpu.dot_dimension_numbers<[1], [0], [0], [1], [0, 0, 1, 1], [], []>} : vector<8x64xf32>, vector<64x64xf32>, vector<8x64xf32> -> vector<8x64xf32>
    %61 = vector.extract_strided_slice %0 {offsets = [8, 0], sizes = [1, 64], strides = [1, 1]} : vector<24x128xf32> to vector<1x64xf32>
    %62 = vector.broadcast %61 : vector<1x64xf32> to vector<8x64xf32>
    %63 = arith.addf %60, %62 : vector<8x64xf32>
    %64 = vector.extract_strided_slice %63 {offsets = [0, 0], sizes = [8, 32], strides = [1, 1]} : vector<8x64xf32> to vector<8x32xf32>
    %65 = vector.extract_strided_slice %63 {offsets = [0, 32], sizes = [8, 32], strides = [1, 1]} : vector<8x64xf32> to vector<8x32xf32>
    %cst_26 = arith.constant 5.000000e-01 : f32
    %66 = vector.broadcast %cst_26 : f32 to vector<8x32xf32>
    %67 = arith.mulf %66, %65 : vector<8x32xf32>
    %68 = math.exp %67 : vector<8x32xf32>
    %69 = arith.mulf %4, %68 : vector<8x32xf32>
    %70 = arith.addf %69, %64 : vector<8x32xf32>
    %c648 = arith.constant 648 : index
    %c0_27 = arith.constant 0 : index
    %71 = vector.load %arg1[%c648, %c0_27] : memref<1384x128xf32, #tpu.memory_space<vmem>>, vector<32x64xf32>
    %cst_28 = arith.constant dense<0.000000e+00> : vector<8x64xf32>
    %72 = tpu.matmul %70, %71, %cst_28 {dimension_numbers = #tpu.dot_dimension_numbers<[1], [0], [0], [1], [0, 0, 1, 1], [], []>} : vector<8x32xf32>, vector<32x64xf32>, vector<8x64xf32> -> vector<8x64xf32>
    %73 = vector.extract_strided_slice %0 {offsets = [9, 0], sizes = [1, 64], strides = [1, 1]} : vector<24x128xf32> to vector<1x64xf32>
    %74 = vector.broadcast %73 : vector<1x64xf32> to vector<8x64xf32>
    %75 = arith.addf %72, %74 : vector<8x64xf32>
    %cst_29 = arith.constant 0.000000e+00 : f32
    %76 = vector.broadcast %cst_29 : f32 to vector<8x64xf32>
    %77 = arith.maximumf %75, %76 : vector<8x64xf32>
    %c680 = arith.constant 680 : index
    %c0_30 = arith.constant 0 : index
    %78 = vector.load %arg1[%c680, %c0_30] : memref<1384x128xf32, #tpu.memory_space<vmem>>, vector<64x128xf32>
    %cst_31 = arith.constant dense<0.000000e+00> : vector<8x128xf32>
    %79 = tpu.matmul %77, %78, %cst_31 {dimension_numbers = #tpu.dot_dimension_numbers<[1], [0], [0], [1], [0, 0, 1, 1], [], []>} : vector<8x64xf32>, vector<64x128xf32>, vector<8x128xf32> -> vector<8x128xf32>
    %80 = vector.extract_strided_slice %0 {offsets = [10, 0], sizes = [1, 128], strides = [1, 1]} : vector<24x128xf32> to vector<1x128xf32>
    %81 = vector.broadcast %80 : vector<1x128xf32> to vector<8x128xf32>
    %82 = arith.addf %79, %81 : vector<8x128xf32>
    %cst_32 = arith.constant 0.000000e+00 : f32
    %83 = vector.broadcast %cst_32 : f32 to vector<8x128xf32>
    %84 = arith.maximumf %82, %83 : vector<8x128xf32>
    %c744 = arith.constant 744 : index
    %c0_33 = arith.constant 0 : index
    %85 = vector.load %arg1[%c744, %c0_33] : memref<1384x128xf32, #tpu.memory_space<vmem>>, vector<128x128xf32>
    %cst_34 = arith.constant dense<0.000000e+00> : vector<8x128xf32>
    %86 = tpu.matmul %84, %85, %cst_34 {dimension_numbers = #tpu.dot_dimension_numbers<[1], [0], [0], [1], [0, 0, 1, 1], [], []>} : vector<8x128xf32>, vector<128x128xf32>, vector<8x128xf32> -> vector<8x128xf32>
    %87 = vector.extract_strided_slice %0 {offsets = [11, 0], sizes = [1, 128], strides = [1, 1]} : vector<24x128xf32> to vector<1x128xf32>
    %88 = vector.broadcast %87 : vector<1x128xf32> to vector<8x128xf32>
    %89 = arith.addf %86, %88 : vector<8x128xf32>
    %cst_35 = arith.constant 0.000000e+00 : f32
    %90 = vector.broadcast %cst_35 : f32 to vector<8x128xf32>
    %91 = arith.maximumf %89, %90 : vector<8x128xf32>
    %c872 = arith.constant 872 : index
    %c0_36 = arith.constant 0 : index
    %92 = vector.load %arg1[%c872, %c0_36] : memref<1384x128xf32, #tpu.memory_space<vmem>>, vector<128x128xf32>
    %cst_37 = arith.constant dense<0.000000e+00> : vector<8x128xf32>
    %93 = tpu.matmul %84, %92, %cst_37 {dimension_numbers = #tpu.dot_dimension_numbers<[1], [0], [0], [1], [0, 0, 1, 1], [], []>} : vector<8x128xf32>, vector<128x128xf32>, vector<8x128xf32> -> vector<8x128xf32>
    %94 = vector.extract_strided_slice %0 {offsets = [12, 0], sizes = [1, 128], strides = [1, 1]} : vector<24x128xf32> to vector<1x128xf32>
    %95 = vector.broadcast %94 : vector<1x128xf32> to vector<8x128xf32>
    %96 = arith.addf %93, %95 : vector<8x128xf32>
    %cst_38 = arith.constant 0.000000e+00 : f32
    %97 = vector.broadcast %cst_38 : f32 to vector<8x128xf32>
    %98 = arith.maximumf %96, %97 : vector<8x128xf32>
    %c1000 = arith.constant 1000 : index
    %c0_39 = arith.constant 0 : index
    %99 = vector.load %arg1[%c1000, %c0_39] : memref<1384x128xf32, #tpu.memory_space<vmem>>, vector<128x32xf32>
    %cst_40 = arith.constant dense<0.000000e+00> : vector<8x32xf32>
    %100 = tpu.matmul %91, %99, %cst_40 {dimension_numbers = #tpu.dot_dimension_numbers<[1], [0], [0], [1], [0, 0, 1, 1], [], []>} : vector<8x128xf32>, vector<128x32xf32>, vector<8x32xf32> -> vector<8x32xf32>
    %c1128 = arith.constant 1128 : index
    %c0_41 = arith.constant 0 : index
    %101 = vector.load %arg1[%c1128, %c0_41] : memref<1384x128xf32, #tpu.memory_space<vmem>>, vector<128x32xf32>
    %cst_42 = arith.constant dense<0.000000e+00> : vector<8x32xf32>
    %102 = tpu.matmul %98, %101, %cst_42 {dimension_numbers = #tpu.dot_dimension_numbers<[1], [0], [0], [1], [0, 0, 1, 1], [], []>} : vector<8x128xf32>, vector<128x32xf32>, vector<8x32xf32> -> vector<8x32xf32>
    %103 = arith.addf %100, %102 : vector<8x32xf32>
    %104 = vector.extract_strided_slice %0 {offsets = [13, 0], sizes = [1, 32], strides = [1, 1]} : vector<24x128xf32> to vector<1x32xf32>
    %105 = vector.broadcast %104 : vector<1x32xf32> to vector<8x32xf32>
    %106 = arith.addf %103, %105 : vector<8x32xf32>
    %cst_43 = arith.constant 0.000000e+00 : f32
    %107 = vector.broadcast %cst_43 : f32 to vector<8x32xf32>
    %108 = arith.maximumf %106, %107 : vector<8x32xf32>
    %c1256 = arith.constant 1256 : index
    %c0_44 = arith.constant 0 : index
    %109 = vector.load %arg1[%c1256, %c0_44] : memref<1384x128xf32, #tpu.memory_space<vmem>>, vector<32x72xf32>
    %cst_45 = arith.constant dense<0.000000e+00> : vector<8x72xf32>
    %110 = tpu.matmul %108, %109, %cst_45 {dimension_numbers = #tpu.dot_dimension_numbers<[1], [0], [0], [1], [0, 0, 1, 1], [], []>} : vector<8x32xf32>, vector<32x72xf32>, vector<8x72xf32> -> vector<8x72xf32>
    %111 = vector.extract_strided_slice %0 {offsets = [15, 0], sizes = [1, 72], strides = [1, 1]} : vector<24x128xf32> to vector<1x72xf32>
    %112 = vector.broadcast %111 : vector<1x72xf32> to vector<8x72xf32>
    %113 = arith.addf %110, %112 : vector<8x72xf32>
    %cst_46 = arith.constant 0.000000e+00 : f32
    %114 = vector.broadcast %cst_46 : f32 to vector<8x72xf32>
    %115 = arith.maximumf %113, %114 : vector<8x72xf32>
    %c1288 = arith.constant 1288 : index
    %c0_47 = arith.constant 0 : index
    %116 = vector.load %arg1[%c1288, %c0_47] : memref<1384x128xf32, #tpu.memory_space<vmem>>, vector<72x72xf32>
    %cst_48 = arith.constant dense<0.000000e+00> : vector<8x72xf32>
    %117 = tpu.matmul %115, %116, %cst_48 {dimension_numbers = #tpu.dot_dimension_numbers<[1], [0], [0], [1], [0, 0, 1, 1], [], []>} : vector<8x72xf32>, vector<72x72xf32>, vector<8x72xf32> -> vector<8x72xf32>
    %118 = vector.extract_strided_slice %0 {offsets = [16, 0], sizes = [1, 72], strides = [1, 1]} : vector<24x128xf32> to vector<1x72xf32>
    %119 = vector.broadcast %118 : vector<1x72xf32> to vector<8x72xf32>
    %120 = arith.addf %117, %119 : vector<8x72xf32>
    %cst_49 = arith.constant 0.000000e+00 : f32
    %121 = vector.broadcast %cst_49 : f32 to vector<8x72xf32>
    %122 = arith.maximumf %120, %121 : vector<8x72xf32>
    %cst_50 = arith.constant 0.000000e+00 : f32
    %123 = vector.broadcast %cst_50 : f32 to vector<8x56xf32>
    %124 = tpu.concatenate %122, %123 in 1 : vector<8x72xf32>, vector<8x56xf32> -> vector<8x128xf32>
    %c0_51 = arith.constant 0 : index
    %c0_52 = arith.constant 0 : index
    %125 = vector.load %arg2[%c0_51, %c0_52] : memref<8x256xf32, #tpu.memory_space<vmem>>, vector<8x128xf32>
    tpu.vector_store %arg2[%c0_51, %c0_52], %124 {strides = array<i32>} : memref<8x256xf32, #tpu.memory_space<vmem>>, vector<8x128xf32>,
    %cst_53 = arith.constant 0.000000e+00 : f32
    %126 = vector.broadcast %cst_53 : f32 to vector<8x64xf32>
    %127 = tpu.concatenate %63, %126 in 1 : vector<8x64xf32>, vector<8x64xf32> -> vector<8x128xf32>
    %c0_54 = arith.constant 0 : index
    %c128_55 = arith.constant 128 : index
    %128 = vector.load %arg2[%c0_54, %c128_55] : memref<8x256xf32, #tpu.memory_space<vmem>>, vector<8x128xf32>
    tpu.vector_store %arg2[%c0_54, %c128_55], %127 {strides = array<i32>} : memref<8x256xf32, #tpu.memory_space<vmem>>, vector<8x128xf32>,
    return
  }
}

</mosaic_0001>

<llo_original>
// kernel: vae_forward.1
$region0: #{vae_forward.1}
  #allocation0 [shape = 'u32[]', space=smem, size = 0x4, offset = 0x4, fixed_abs, tag = 'smem constant byte address 0x4 - core index']
  #allocation1 [shape = 'u32[144,128]{1,0:T(1,128)}', space=vmem, size = 0x12000, scoped, tag = 'internal scratch']
  %s0 = inlined_call_operand.vmem [shape: f32[8,128], index: 0, kind: input, shape index: {}]
  %s1 = inlined_call_operand.hbm [shape: f32[1384,128], index: 1, kind: input, shape index: {}]
  %s2 = inlined_call_operand.vmem [shape: f32[8,256], index: 2, kind: output, shape index: {}]
  %s3 = sld [smem:[#allocation0]]
  $region22: #{vae_forward.1} parent=0
    _
  %s5 = ssub.s32 1, %s3
  %s6 = scalar_select 0, %s5, %s3
  $region1: #{vae_forward.1} parent=0
    #allocation2 [shape = 'u8[708608]{0}', space=vmem, size = 0xad000, scoped, tag = 'input window, operand 1, single buffered']
    #allocation3 [shape = 's32[1]{0}', space=sflag, size = 0x4, scoped, tag = 'scoped memory for vae_forward.1']
    %7 = vsyncpa [#allocation3], 0
    // Predicated region
    $region2: #{vae_forward.1} parent=1 // pred_check
      _
    $region3: #{vae_forward.1} parent=1 // pred_check_branch
      %9 = sbr.rel (0) target = $region5
    $region4: #{vae_forward.1} parent=1 // pred_region
      _
    $region5: #{vae_forward.1} parent=1 // pred_fallthru
      _
    // Predicated region
    $region6: #{vae_forward.1} parent=1 // pred_check
      _
    $region7: #{vae_forward.1} parent=1 // pred_check_branch
      %11 = sbr.rel (0) target = $region9
    $region8: #{vae_forward.1} parent=1 // pred_region
      %s13 = ssub.s32 22144, 22144
      %14 = vsyncadd [#allocation3], %s13
      %s15 = sshll.u32 [#allocation2], 4
      %s16 = int_to_ptr.vmem [resolvable:$true] %s15
      %21 = dma.hbm_to_vmem [thread:$0]  %s1, 22144, %s16, [#allocation3], 128, 128, 8
    $region9: #{vae_forward.1} parent=1 // pred_fallthru
      _
    // Predicated region
    $region10: #{vae_forward.1} parent=1 // pred_check
      _
    $region11: #{vae_forward.1} parent=1 // pred_check_branch
      %23 = sbr.rel (0) target = $region13
    $region12: #{vae_forward.1} parent=1 // pred_region
      %24 = dma.done [#allocation3], 22144
    $region13: #{vae_forward.1} parent=1 // pred_fallthru
      _
    %v25 = vld [vmem:[#allocation2 + $0x550] sm:$0xff]
    %v26 = vld [vmem:[#allocation2 + $0x558] sm:$0xff]
    %v27 = vld [vmem:[#allocation2 + $0x560] sm:$0xff]
    %v28 = vld [vmem:[%s0] sm:$0xff]
    %v29 = vld [vmem:[#allocation2] sm:$0xff]
    %v30 = vld [vmem:[#allocation2 + $0x8] sm:$0xff]
    %v31 = vld [vmem:[#allocation2 + $0x10] sm:$0xff]
    %v32 = vld [vmem:[#allocation2 + $0x18] sm:$0xff]
    %v33 = vld [vmem:[#allocation2 + $0x20] sm:$0xff]
    %v34 = vld [vmem:[#allocation2 + $0x28] sm:$0xff]
    %v35 = vld [vmem:[#allocation2 + $0x30] sm:$0xff]
    %v36 = vld [vmem:[#allocation2 + $0x38] sm:$0xff]
    %v37 = vlaneseq
    %v38 = vshrl.u32 %v37, 7
    %v39 = vsub.s32 0, %v38
    %v40 = vrot.slane %v25, %v39
    %vm41 = vcmask 523264
    %v43 = vsel %vm41, %v28, 0
    %45 = vmatprep.subr.mxu0 0.0
    %46 = vmatpush1.msra.mxu0 %v29
    %47 = vmatprep.subr.mxu0 0.0
    %48 = vmatpush1.msra.mxu0 %v30
    %49 = vmatprep.subr.mxu0 0.0
    %50 = vmatpush1.msra.mxu0 %v31
    %51 = vmatprep.subr.mxu0 0.0
    %52 = vmatpush1.msra.mxu0 %v32
    %53 = vmatprep.subr.mxu0 0.0
    %54 = vmatpush1.msra.mxu0 %v33
    %55 = vmatprep.subr.mxu0 0.0
    %56 = vmatpush1.msra.mxu0 %v34
    %57 = vmatprep.subr.mxu0 0.0
    %58 = vmatpush1.msra.mxu0 %v35
    %59 = vmatprep.subr.mxu0 0.0
    %60 = vmatpush1.msra.mxu0 %v36
    %61 = vmatprep.subr.mxu0 0.0
    %62 = vmatpush1.msra.mxu0 0.0
    %63 = vmatprep.subr.mxu0 0.0
    %64 = vmatpush1.msra.mxu0 0.0
    %65 = vmatprep.subr.mxu0 0.0
    %66 = vmatpush1.msra.mxu0 0.0
    %67 = vmatprep.subr.mxu0 0.0
    %68 = vmatpush1.msra.mxu0 0.0
    %69 = vmatprep.subr.mxu0 0.0
    %70 = vmatpush1.msra.mxu0 0.0
    %71 = vmatprep.subr.mxu0 0.0
    %72 = vmatpush1.msra.mxu0 0.0
    %73 = vmatprep.subr.mxu0 0.0
    %74 = vmatpush1.msra.mxu0 0.0
    %75 = vmatprep.subr.mxu0 0.0
    %76 = vmatpush1.msra.mxu0 0.0
    %77 = vmatprep.subr.mxu0 0.0
    %78 = vmatpush1.msra.mxu0 0.0
    %79 = vmatprep.subr.mxu0 0.0
    %80 = vmatpush1.msra.mxu0 0.0
    %81 = vmatprep.subr.mxu0 0.0
    %82 = vmatpush1.msra.mxu0 0.0
    %83 = vmatprep.subr.mxu0 0.0
    %84 = vmatpush1.msra.mxu0 0.0
    %85 = vmatprep.subr.mxu0 0.0
    %86 = vmatpush1.msra.mxu0 0.0
    %87 = vmatprep.subr.mxu0 0.0
    %88 = vmatpush1.msra.mxu0 0.0
    %89 = vmatprep.subr.mxu0 0.0
    %90 = vmatpush1.msra.mxu0 0.0
    %91 = vmatprep.subr.mxu0 0.0
    %92 = vmatpush1.msra.mxu0 0.0
    %93 = vmatprep.subr.mxu0 0.0
    %94 = vmatpush1.msra.mxu0 0.0
    %95 = vmatprep.subr.mxu0 0.0
    %96 = vmatpush1.msra.mxu0 0.0
    %97 = vmatprep.subr.mxu0 0.0
    %98 = vmatpush1.msra.mxu0 0.0
    %99 = vmatprep.subr.mxu0 0.0
    %100 = vmatpush1.msra.mxu0 0.0
    %101 = vmatprep.subr.mxu0 0.0
    %102 = vmatpush1.msra.mxu0 0.0
    %103 = vmatprep.subr.mxu0 0.0
    %104 = vmatpush1.msra.mxu0 0.0
    %105 = vmatprep.subr.mxu0 0.0
    %106 = vmatpush1.msra.mxu0 0.0
    %107 = vmatprep.subr.mxu0 0.0
    %108 = vmatpush1.msra.mxu0 0.0
    %109 = vmatprep.mubr.f32.mxu0 0.0
    %110 = vmatmul.mubr.f32.gmra.mrb[0].mxu0 %v43
    %v111 = vpop.f32.mrb[0].mxu0
    %v112 = vadd.f32 %v40, %v111
    %v113 = vpop.f32.mrb[0].mxu0
    %114 = vdwg.mxu0
    %v115 = vmax.f32 %v112, 0.0
    %v116 = vld [vmem:[#allocation2 + $0x40] sm:$0xff]
    %v117 = vld [vmem:[#allocation2 + $0x48] sm:$0xff]
    %v118 = vld [vmem:[#allocation2 + $0x50] sm:$0xff]
    %v119 = vld [vmem:[#allocation2 + $0x58] sm:$0xff]
    %v120 = vld [vmem:[#allocation2 + $0x60] sm:$0xff]
    %v121 = vld [vmem:[#allocation2 + $0x68] sm:$0xff]
    %v122 = vld [vmem:[#allocation2 + $0x70] sm:$0xff]
    %v123 = vld [vmem:[#allocation2 + $0x78] sm:$0xff]
    %v124 = vlaneseq
    %v125 = vshrl.u32 %v124, 7
    %v126 = vsub.s32 1, %v125
    %v127 = vrot.slane %v25, %v126
    %v129 = vsel %vm41, %v115, 0
    %131 = vmatprep.subr.mxu0 0.0
    %132 = vmatpush1.msra.mxu0 %v116
    %133 = vmatprep.subr.mxu0 0.0
    %134 = vmatpush1.msra.mxu0 %v117
    %135 = vmatprep.subr.mxu0 0.0
    %136 = vmatpush1.msra.mxu0 %v118
    %137 = vmatprep.subr.mxu0 0.0
    %138 = vmatpush1.msra.mxu0 %v119
    %139 = vmatprep.subr.mxu0 0.0
    %140 = vmatpush1.msra.mxu0 %v120
    %141 = vmatprep.subr.mxu0 0.0
    %142 = vmatpush1.msra.mxu0 %v121
    %143 = vmatprep.subr.mxu0 0.0
    %144 = vmatpush1.msra.mxu0 %v122
    %145 = vmatprep.subr.mxu0 0.0
    %146 = vmatpush1.msra.mxu0 %v123
    %147 = vmatprep.subr.mxu0 0.0
    %148 = vmatpush1.msra.mxu0 0.0
    %149 = vmatprep.subr.mxu0 0.0
    %150 = vmatpush1.msra.mxu0 0.0
    %151 = vmatprep.subr.mxu0 0.0
    %152 = vmatpush1.msra.mxu0 0.0
    %153 = vmatprep.subr.mxu0 0.0
    %154 = vmatpush1.msra.mxu0 0.0
    %155 = vmatprep.subr.mxu0 0.0
    %156 = vmatpush1.msra.mxu0 0.0
    %157 = vmatprep.subr.mxu0 0.0
    %158 = vmatpush1.msra.mxu0 0.0
    %159 = vmatprep.subr.mxu0 0.0
    %160 = vmatpush1.msra.mxu0 0.0
    %161 = vmatprep.subr.mxu0 0.0
    %162 = vmatpush1.msra.mxu0 0.0
    %163 = vmatprep.subr.mxu0 0.0
    %164 = vmatpush1.msra.mxu0 0.0
    %165 = vmatprep.subr.mxu0 0.0
    %166 = vmatpush1.msra.mxu0 0.0
    %167 = vmatprep.subr.mxu0 0.0
    %168 = vmatpush1.msra.mxu0 0.0
    %169 = vmatprep.subr.mxu0 0.0
    %170 = vmatpush1.msra.mxu0 0.0
    %171 = vmatprep.subr.mxu0 0.0
    %172 = vmatpush1.msra.mxu0 0.0
    %173 = vmatprep.subr.mxu0 0.0
    %174 = vmatpush1.msra.mxu0 0.0
    %175 = vmatprep.subr.mxu0 0.0
    %176 = vmatpush1.msra.mxu0 0.0
    %177 = vmatprep.subr.mxu0 0.0
    %178 = vmatpush1.msra.mxu0 0.0
    %179 = vmatprep.subr.mxu0 0.0
    %180 = vmatpush1.msra.mxu0 0.0
    %181 = vmatprep.subr.mxu0 0.0
    %182 = vmatpush1.msra.mxu0 0.0
    %183 = vmatprep.subr.mxu0 0.0
    %184 = vmatpush1.msra.mxu0 0.0
    %185 = vmatprep.subr.mxu0 0.0
    %186 = vmatpush1.msra.mxu0 0.0
    %187 = vmatprep.subr.mxu0 0.0
    %188 = vmatpush1.msra.mxu0 0.0
    %189 = vmatprep.subr.mxu0 0.0
    %190 = vmatpush1.msra.mxu0 0.0
    %191 = vmatprep.subr.mxu0 0.0
    %192 = vmatpush1.msra.mxu0 0.0
    %193 = vmatprep.subr.mxu0 0.0
    %194 = vmatpush1.msra.mxu0 0.0
    %195 = vmatprep.mubr.f32.mxu0 0.0
    %196 = vmatmul.mubr.f32.gmra.mrb[0].mxu0 %v129
    %v197 = vpop.f32.mrb[0].mxu0
    %v198 = vadd.f32 %v127, %v197
    %v199 = vpop.f32.mrb[0].mxu0
    %200 = vdwg.mxu0
    %v201 = vmax.f32 %v198, 0.0
    %v202 = vld [vmem:[#allocation2 + $0x80] sm:$0x1]
    %v203 = vlaneseq
    %v204 = vshrl.u32 %v203, 7
    %v205 = vsub.s32 0, %v204
    %v206 = vrot.slane %v202, %v205
    %208 = vrot.lane.b32.xlu0 %v206, 64
    %v209 = vpop.permute.xlu0 %208
    %v211 = vmul.f32 %v28, %v209
    %v212 = vlaneseq
    %v213 = vshrl.u32 %v212, 7
    %v214 = vsub.s32 2, %v213
    %v215 = vrot.slane %v25, %v214
    %217 = vrot.lane.b32.xlu0 %v215, 64
    %v218 = vpop.permute.xlu0 %217
    %v220 = vadd.f32 %v211, %v218
    %v221 = vmax.f32 %v220, 0.0
    %223 = vrot.lane.b32.xlu0 %v221, 64
    %v224 = vpop.permute.xlu0 %223
    %v226 = vadd.f32 %v201, %v224
    %v227 = vld [vmem:[#allocation2 + $0x88] sm:$0xff]
    %v228 = vld [vmem:[#allocation2 + $0x90] sm:$0xff]
    %v229 = vld [vmem:[#allocation2 + $0x98] sm:$0xff]
    %v230 = vld [vmem:[#allocation2 + $0xa0] sm:$0xff]
    %v231 = vlaneseq
    %v232 = vshrl.u32 %v231, 7
    %v233 = vsub.s32 3, %v232
    %v234 = vrot.slane %v25, %v233
    %vm235 = vcmask 261120
    %v237 = vsel %vm235, %v226, 0
    %239 = vmatprep.subr.mxu0 0.0
    %240 = vmatpush1.msra.mxu0 %v227
    %241 = vmatprep.subr.mxu0 0.0
    %242 = vmatpush1.msra.mxu0 %v228
    %243 = vmatprep.subr.mxu0 0.0
    %244 = vmatpush1.msra.mxu0 %v229
    %245 = vmatprep.subr.mxu0 0.0
    %246 = vmatpush1.msra.mxu0 %v230
    %247 = vmatprep.subr.mxu0 0.0
    %248 = vmatpush1.msra.mxu0 0.0
    %249 = vmatprep.subr.mxu0 0.0
    %250 = vmatpush1.msra.mxu0 0.0
    %251 = vmatprep.subr.mxu0 0.0
    %252 = vmatpush1.msra.mxu0 0.0
    %253 = vmatprep.subr.mxu0 0.0
    %254 = vmatpush1.msra.mxu0 0.0
    %255 = vmatprep.subr.mxu0 0.0
    %256 = vmatpush1.msra.mxu0 0.0
    %257 = vmatprep.subr.mxu0 0.0
    %258 = vmatpush1.msra.mxu0 0.0
    %259 = vmatprep.subr.mxu0 0.0
    %260 = vmatpush1.msra.mxu0 0.0
    %261 = vmatprep.subr.mxu0 0.0
    %262 = vmatpush1.msra.mxu0 0.0
    %263 = vmatprep.subr.mxu0 0.0
    %264 = vmatpush1.msra.mxu0 0.0
    %265 = vmatprep.subr.mxu0 0.0
    %266 = vmatpush1.msra.mxu0 0.0
    %267 = vmatprep.subr.mxu0 0.0
    %268 = vmatpush1.msra.mxu0 0.0
    %269 = vmatprep.subr.mxu0 0.0
    %270 = vmatpush1.msra.mxu0 0.0
    %271 = vmatprep.subr.mxu0 0.0
    %272 = vmatpush1.msra.mxu0 0.0
    %273 = vmatprep.subr.mxu0 0.0
    %274 = vmatpush1.msra.mxu0 0.0
    %275 = vmatprep.subr.mxu0 0.0
    %276 = vmatpush1.msra.mxu0 0.0
    %277 = vmatprep.subr.mxu0 0.0
    %278 = vmatpush1.msra.mxu0 0.0
    %279 = vmatprep.subr.mxu0 0.0
    %280 = vmatpush1.msra.mxu0 0.0
    %281 = vmatprep.subr.mxu0 0.0
    %282 = vmatpush1.msra.mxu0 0.0
    %283 = vmatprep.subr.mxu0 0.0
    %284 = vmatpush1.msra.mxu0 0.0
    %285 = vmatprep.subr.mxu0 0.0
    %286 = vmatpush1.msra.mxu0 0.0
    %287 = vmatprep.subr.mxu0 0.0
    %288 = vmatpush1.msra.mxu0 0.0
    %289 = vmatprep.subr.mxu0 0.0
    %290 = vmatpush1.msra.mxu0 0.0
    %291 = vmatprep.subr.mxu0 0.0
    %292 = vmatpush1.msra.mxu0 0.0
    %293 = vmatprep.subr.mxu0 0.0
    %294 = vmatpush1.msra.mxu0 0.0
    %295 = vmatprep.subr.mxu0 0.0
    %296 = vmatpush1.msra.mxu0 0.0
    %297 = vmatprep.subr.mxu0 0.0
    %298 = vmatpush1.msra.mxu0 0.0
    %299 = vmatprep.subr.mxu0 0.0
    %300 = vmatpush1.msra.mxu0 0.0
    %301 = vmatprep.subr.mxu0 0.0
    %302 = vmatpush1.msra.mxu0 0.0
    %303 = vmatprep.mubr.f32.mxu0 0.0
    %304 = vmatmul.mubr.f32.gmra.mrb[0].mxu0 %v237
    %v305 = vpop.f32.mrb[0].mxu0
    %v306 = vadd.f32 %v234, %v305
    %v307 = vpop.f32.mrb[0].mxu0
    %308 = vdwg.mxu0
    %v309 = vmax.f32 %v306, 0.0
    %v310 = vld [vmem:[#allocation2 + $0xa8] sm:$0xff]
    %v311 = vld [vmem:[#allocation2 + $0xb0] sm:$0xff]
    %v312 = vld [vmem:[#allocation2 + $0xb8] sm:$0xff]
    %v313 = vld [vmem:[#allocation2 + $0xc0] sm:$0xff]
    %v314 = vlaneseq
    %v315 = vshrl.u32 %v314, 7
    %v316 = vsub.s32 4, %v315
    %v317 = vrot.slane %v25, %v316
    %318 = vmatprep.subr.mxu0 0.0
    %319 = vmatpush1.msra.mxu0 %v310
    %320 = vmatprep.subr.mxu0 0.0
    %321 = vmatpush1.msra.mxu0 %v311
    %322 = vmatprep.subr.mxu0 0.0
    %323 = vmatpush1.msra.mxu0 %v312
    %324 = vmatprep.subr.mxu0 0.0
    %325 = vmatpush1.msra.mxu0 %v313
    %326 = vmatprep.subr.mxu0 0.0
    %327 = vmatpush1.msra.mxu0 0.0
    %328 = vmatprep.subr.mxu0 0.0
    %329 = vmatpush1.msra.mxu0 0.0
    %330 = vmatprep.subr.mxu0 0.0
    %331 = vmatpush1.msra.mxu0 0.0
    %332 = vmatprep.subr.mxu0 0.0
    %333 = vmatpush1.msra.mxu0 0.0
    %334 = vmatprep.subr.mxu0 0.0
    %335 = vmatpush1.msra.mxu0 0.0
    %336 = vmatprep.subr.mxu0 0.0
    %337 = vmatpush1.msra.mxu0 0.0
    %338 = vmatprep.subr.mxu0 0.0
    %339 = vmatpush1.msra.mxu0 0.0
    %340 = vmatprep.subr.mxu0 0.0
    %341 = vmatpush1.msra.mxu0 0.0
    %342 = vmatprep.subr.mxu0 0.0
    %343 = vmatpush1.msra.mxu0 0.0
    %344 = vmatprep.subr.mxu0 0.0
    %345 = vmatpush1.msra.mxu0 0.0
    %346 = vmatprep.subr.mxu0 0.0
    %347 = vmatpush1.msra.mxu0 0.0
    %348 = vmatprep.subr.mxu0 0.0
    %349 = vmatpush1.msra.mxu0 0.0
    %350 = vmatprep.subr.mxu0 0.0
    %351 = vmatpush1.msra.mxu0 0.0
    %352 = vmatprep.subr.mxu0 0.0
    %353 = vmatpush1.msra.mxu0 0.0
    %354 = vmatprep.subr.mxu0 0.0
    %355 = vmatpush1.msra.mxu0 0.0
    %356 = vmatprep.subr.mxu0 0.0
    %357 = vmatpush1.msra.mxu0 0.0
    %358 = vmatprep.subr.mxu0 0.0
    %359 = vmatpush1.msra.mxu0 0.0
    %360 = vmatprep.subr.mxu0 0.0
    %361 = vmatpush1.msra.mxu0 0.0
    %362 = vmatprep.subr.mxu0 0.0
    %363 = vmatpush1.msra.mxu0 0.0
    %364 = vmatprep.subr.mxu0 0.0
    %365 = vmatpush1.msra.mxu0 0.0
    %366 = vmatprep.subr.mxu0 0.0
    %367 = vmatpush1.msra.mxu0 0.0
    %368 = vmatprep.subr.mxu0 0.0
    %369 = vmatpush1.msra.mxu0 0.0
    %370 = vmatprep.subr.mxu0 0.0
    %371 = vmatpush1.msra.mxu0 0.0
    %372 = vmatprep.subr.mxu0 0.0
    %373 = vmatpush1.msra.mxu0 0.0
    %374 = vmatprep.subr.mxu0 0.0
    %375 = vmatpush1.msra.mxu0 0.0
    %376 = vmatprep.subr.mxu0 0.0
    %377 = vmatpush1.msra.mxu0 0.0
    %378 = vmatprep.subr.mxu0 0.0
    %379 = vmatpush1.msra.mxu0 0.0
    %380 = vmatprep.subr.mxu0 0.0
    %381 = vmatpush1.msra.mxu0 0.0
    %382 = vmatprep.mubr.f32.mxu0 0.0
    %383 = vmatmul.mubr.f32.gmra.mrb[0].mxu0 %v237
    %v384 = vpop.f32.mrb[0].mxu0
    %v385 = vadd.f32 %v317, %v384
    %v386 = vpop.f32.mrb[0].mxu0
    %387 = vdwg.mxu0
    %v388 = vmax.f32 %v385, 0.0
    %v389 = vld [vmem:[#allocation2 + $0xc8] sm:$0xff]
    %v390 = vld [vmem:[#allocation2 + $0xd0] sm:$0xff]
    %v391 = vld [vmem:[#allocation2 + $0xd8] sm:$0xff]
    %v392 = vld [vmem:[#allocation2 + $0xe0] sm:$0xff]
    %v393 = vld [vmem:[#allocation2 + $0xe8] sm:$0xff]
    %v394 = vld [vmem:[#allocation2 + $0xf0] sm:$0xff]
    %v395 = vld [vmem:[#allocation2 + $0xf8] sm:$0xff]
    %v396 = vld [vmem:[#allocation2 + $0x100] sm:$0xff]
    %v397 = vld [vmem:[#allocation2 + $0x108] sm:$0xff]
    %v398 = vld [vmem:[#allocation2 + $0x110] sm:$0xff]
    %v399 = vld [vmem:[#allocation2 + $0x118] sm:$0xff]
    %v400 = vld [vmem:[#allocation2 + $0x120] sm:$0xff]
    %v401 = vld [vmem:[#allocation2 + $0x128] sm:$0xff]
    %v402 = vld [vmem:[#allocation2 + $0x130] sm:$0xff]
    %v403 = vld [vmem:[#allocation2 + $0x138] sm:$0xff]
    %v404 = vld [vmem:[#allocation2 + $0x140] sm:$0xff]
    %v405 = vld [vmem:[#allocation2 + $0x148] sm:$0xff]
    %v406 = vld [vmem:[#allocation2 + $0x150] sm:$0xff]
    %v407 = vld [vmem:[#allocation2 + $0x158] sm:$0xff]
    %v408 = vld [vmem:[#allocation2 + $0x160] sm:$0xff]
    %v409 = vld [vmem:[#allocation2 + $0x168] sm:$0xff]
    %v410 = vld [vmem:[#allocation2 + $0x170] sm:$0xff]
    %v411 = vld [vmem:[#allocation2 + $0x178] sm:$0xff]
    %v412 = vld [vmem:[#allocation2 + $0x180] sm:$0xff]
    %v413 = vld [vmem:[#allocation2 + $0x188] sm:$0xff]
    %v414 = vld [vmem:[#allocation2 + $0x190] sm:$0xff]
    %v415 = vld [vmem:[#allocation2 + $0x198] sm:$0xff]
    %v416 = vld [vmem:[#allocation2 + $0x1a0] sm:$0xff]
    %v417 = vld [vmem:[#allocation2 + $0x1a8] sm:$0xff]
    %v418 = vld [vmem:[#allocation2 + $0x1b0] sm:$0xff]
    %v419 = vld [vmem:[#allocation2 + $0x1b8] sm:$0xff]
    %v420 = vld [vmem:[#allocation2 + $0x1c0] sm:$0xff]
    %421 = vmatprep.subr.mxu0 0.0
    %422 = vmatpush1.msra.mxu0 %v405
    %423 = vmatprep.subr.mxu0 0.0
    %424 = vmatpush1.msra.mxu0 %v406
    %425 = vmatprep.subr.mxu0 0.0
    %426 = vmatpush1.msra.mxu0 %v407
    %427 = vmatprep.subr.mxu0 0.0
    %428 = vmatpush1.msra.mxu0 %v408
    %429 = vmatprep.subr.mxu0 0.0
    %430 = vmatpush1.msra.mxu0 %v409
    %431 = vmatprep.subr.mxu0 0.0
    %432 = vmatpush1.msra.mxu0 %v410
    %433 = vmatprep.subr.mxu0 0.0
    %434 = vmatpush1.msra.mxu0 %v411
    %435 = vmatprep.subr.mxu0 0.0
    %436 = vmatpush1.msra.mxu0 %v412
    %437 = vmatprep.subr.mxu0 0.0
    %438 = vmatpush1.msra.mxu0 %v413
    %439 = vmatprep.subr.mxu0 0.0
    %440 = vmatpush1.msra.mxu0 %v414
    %441 = vmatprep.subr.mxu0 0.0
    %442 = vmatpush1.msra.mxu0 %v415
    %443 = vmatprep.subr.mxu0 0.0
    %444 = vmatpush1.msra.mxu0 %v416
    %445 = vmatprep.subr.mxu0 0.0
    %446 = vmatpush1.msra.mxu0 %v417
    %447 = vmatprep.subr.mxu0 0.0
    %448 = vmatpush1.msra.mxu0 %v418
    %449 = vmatprep.subr.mxu0 0.0
    %450 = vmatpush1.msra.mxu0 %v419
    %451 = vmatprep.subr.mxu0 0.0
    %452 = vmatpush1.msra.mxu0 %v420
    %453 = vmatprep.subr.mxu0 0.0
    %454 = vmatpush1.msra.mxu0 0.0
    %455 = vmatprep.subr.mxu0 0.0
    %456 = vmatpush1.msra.mxu0 0.0
    %457 = vmatprep.subr.mxu0 0.0
    %458 = vmatpush1.msra.mxu0 0.0
    %459 = vmatprep.subr.mxu0 0.0
    %460 = vmatpush1.msra.mxu0 0.0
    %461 = vmatprep.subr.mxu0 0.0
    %462 = vmatpush1.msra.mxu0 0.0
    %463 = vmatprep.subr.mxu0 0.0
    %464 = vmatpush1.msra.mxu0 0.0
    %465 = vmatprep.subr.mxu0 0.0
    %466 = vmatpush1.msra.mxu0 0.0
    %467 = vmatprep.subr.mxu0 0.0
    %468 = vmatpush1.msra.mxu0 0.0
    %469 = vmatprep.subr.mxu0 0.0
    %470 = vmatpush1.msra.mxu0 0.0
    %471 = vmatprep.subr.mxu0 0.0
    %472 = vmatpush1.msra.mxu0 0.0
    %473 = vmatprep.subr.mxu0 0.0
    %474 = vmatpush1.msra.mxu0 0.0
    %475 = vmatprep.subr.mxu0 0.0
    %476 = vmatpush1.msra.mxu0 0.0
    %477 = vmatprep.subr.mxu0 0.0
    %478 = vmatpush1.msra.mxu0 0.0
    %479 = vmatprep.subr.mxu0 0.0
    %480 = vmatpush1.msra.mxu0 0.0
    %481 = vmatprep.subr.mxu0 0.0
    %482 = vmatpush1.msra.mxu0 0.0
    %483 = vmatprep.subr.mxu0 0.0
    %484 = vmatpush1.msra.mxu0 0.0
    %485 = vmatprep.mubr.f32.mxu0 0.0
    %486 = vmatmul.mubr.f32.gmra.mrb[0].mxu0 %v388
    %v487 = vpop.f32.mrb[0].mxu0
    %v488 = vadd.f32 0.0, %v487
    %v489 = vpop.f32.mrb[0].mxu0
    %490 = vdwg.mxu0
    %491 = vmatprep.subr.mxu0 0.0
    %492 = vmatpush1.msra.mxu0 %v389
    %493 = vmatprep.subr.mxu0 0.0
    %494 = vmatpush1.msra.mxu0 %v390
    %495 = vmatprep.subr.mxu0 0.0
    %496 = vmatpush1.msra.mxu0 %v391
    %497 = vmatprep.subr.mxu0 0.0
    %498 = vmatpush1.msra.mxu0 %v392
    %499 = vmatprep.subr.mxu0 0.0
    %500 = vmatpush1.msra.mxu0 %v393
    %501 = vmatprep.subr.mxu0 0.0
    %502 = vmatpush1.msra.mxu0 %v394
    %503 = vmatprep.subr.mxu0 0.0
    %504 = vmatpush1.msra.mxu0 %v395
    %505 = vmatprep.subr.mxu0 0.0
    %506 = vmatpush1.msra.mxu0 %v396
    %507 = vmatprep.subr.mxu0 0.0
    %508 = vmatpush1.msra.mxu0 %v397
    %509 = vmatprep.subr.mxu0 0.0
    %510 = vmatpush1.msra.mxu0 %v398
    %511 = vmatprep.subr.mxu0 0.0
    %512 = vmatpush1.msra.mxu0 %v399
    %513 = vmatprep.subr.mxu0 0.0
    %514 = vmatpush1.msra.mxu0 %v400
    %515 = vmatprep.subr.mxu0 0.0
    %516 = vmatpush1.msra.mxu0 %v401
    %517 = vmatprep.subr.mxu0 0.0
    %518 = vmatpush1.msra.mxu0 %v402
    %519 = vmatprep.subr.mxu0 0.0
    %520 = vmatpush1.msra.mxu0 %v403
    %521 = vmatprep.subr.mxu0 0.0
    %522 = vmatpush1.msra.mxu0 %v404
    %523 = vmatprep.subr.mxu0 0.0
    %524 = vmatpush1.msra.mxu0 0.0
    %525 = vmatprep.subr.mxu0 0.0
    %526 = vmatpush1.msra.mxu0 0.0
    %527 = vmatprep.subr.mxu0 0.0
    %528 = vmatpush1.msra.mxu0 0.0
    %529 = vmatprep.subr.mxu0 0.0
    %530 = vmatpush1.msra.mxu0 0.0
    %531 = vmatprep.subr.mxu0 0.0
    %532 = vmatpush1.msra.mxu0 0.0
    %533 = vmatprep.subr.mxu0 0.0
    %534 = vmatpush1.msra.mxu0 0.0
    %535 = vmatprep.subr.mxu0 0.0
    %536 = vmatpush1.msra.mxu0 0.0
    %537 = vmatprep.subr.mxu0 0.0
    %538 = vmatpush1.msra.mxu0 0.0
    %539 = vmatprep.subr.mxu0 0.0
    %540 = vmatpush1.msra.mxu0 0.0
    %541 = vmatprep.subr.mxu0 0.0
    %542 = vmatpush1.msra.mxu0 0.0
    %543 = vmatprep.subr.mxu0 0.0
    %544 = vmatpush1.msra.mxu0 0.0
    %545 = vmatprep.subr.mxu0 0.0
    %546 = vmatpush1.msra.mxu0 0.0
    %547 = vmatprep.subr.mxu0 0.0
    %548 = vmatpush1.msra.mxu0 0.0
    %549 = vmatprep.subr.mxu0 0.0
    %550 = vmatpush1.msra.mxu0 0.0
    %551 = vmatprep.subr.mxu0 0.0
    %552 = vmatpush1.msra.mxu0 0.0
    %553 = vmatprep.subr.mxu0 0.0
    %554 = vmatpush1.msra.mxu0 0.0
    %555 = vmatprep.mubr.f32.mxu0 0.0
    %556 = vmatmul.mubr.f32.gmra.mrb[0].mxu0 %v309
    %v557 = vpop.f32.mrb[0].mxu0
    %v558 = vadd.f32 %v488, %v557
    %v559 = vpop.f32.mrb[0].mxu0
    %560 = vdwg.mxu0
    %v561 = vlaneseq
    %v562 = vshrl.u32 %v561, 7
    %v563 = vsub.s32 5, %v562
    %v564 = vrot.slane %v25, %v563
    %v565 = vadd.f32 %v558, %v564
    %v566 = vmax.f32 %v565, 0.0
    %v567 = vld [vmem:[#allocation2 + $0x1c8] sm:$0xff]
    %v568 = vld [vmem:[#allocation2 + $0x1d0] sm:$0xff]
    %v569 = vld [vmem:[#allocation2 + $0x1d8] sm:$0xff]
    %v570 = vld [vmem:[#allocation2 + $0x1e0] sm:$0xff]
    %v571 = vld [vmem:[#allocation2 + $0x1e8] sm:$0xff]
    %v572 = vld [vmem:[#allocation2 + $0x1f0] sm:$0xff]
    %v573 = vld [vmem:[#allocation2 + $0x1f8] sm:$0xff]
    %v574 = vld [vmem:[#allocation2 + $0x200] sm:$0xff]
    %v575 = vld [vmem:[#allocation2 + $0x208] sm:$0xff]
    %v576 = vld [vmem:[#allocation2 + $0x210] sm:$0xff]
    %v577 = vld [vmem:[#allocation2 + $0x218] sm:$0xff]
    %v578 = vld [vmem:[#allocation2 + $0x220] sm:$0xff]
    %v579 = vld [vmem:[#allocation2 + $0x228] sm:$0xff]
    %v580 = vld [vmem:[#allocation2 + $0x230] sm:$0xff]
    %v581 = vld [vmem:[#allocation2 + $0x238] sm:$0xff]
    %v582 = vld [vmem:[#allocation2 + $0x240] sm:$0xff]
    %v583 = vlaneseq
    %v584 = vshrl.u32 %v583, 7
    %v585 = vsub.s32 7, %v584
    %v586 = vrot.slane %v25, %v585
    %587 = vmatprep.subr.mxu0 0.0
    %588 = vmatpush1.msra.mxu0 %v567
    %589 = vmatprep.subr.mxu0 0.0
    %590 = vmatpush1.msra.mxu0 %v568
    %591 = vmatprep.subr.mxu0 0.0
    %592 = vmatpush1.msra.mxu0 %v569
    %593 = vmatprep.subr.mxu0 0.0
    %594 = vmatpush1.msra.mxu0 %v570
    %595 = vmatprep.subr.mxu0 0.0
    %596 = vmatpush1.msra.mxu0 %v571
    %597 = vmatprep.subr.mxu0 0.0
    %598 = vmatpush1.msra.mxu0 %v572
    %599 = vmatprep.subr.mxu0 0.0
    %600 = vmatpush1.msra.mxu0 %v573
    %601 = vmatprep.subr.mxu0 0.0
    %602 = vmatpush1.msra.mxu0 %v574
    %603 = vmatprep.subr.mxu0 0.0
    %604 = vmatpush1.msra.mxu0 %v575
    %605 = vmatprep.subr.mxu0 0.0
    %606 = vmatpush1.msra.mxu0 %v576
    %607 = vmatprep.subr.mxu0 0.0
    %608 = vmatpush1.msra.mxu0 %v577
    %609 = vmatprep.subr.mxu0 0.0
    %610 = vmatpush1.msra.mxu0 %v578
    %611 = vmatprep.subr.mxu0 0.0
    %612 = vmatpush1.msra.mxu0 %v579
    %613 = vmatprep.subr.mxu0 0.0
    %614 = vmatpush1.msra.mxu0 %v580
    %615 = vmatprep.subr.mxu0 0.0
    %616 = vmatpush1.msra.mxu0 %v581
    %617 = vmatprep.subr.mxu0 0.0
    %618 = vmatpush1.msra.mxu0 %v582
    %619 = vmatprep.subr.mxu0 0.0
    %620 = vmatpush1.msra.mxu0 0.0
    %621 = vmatprep.subr.mxu0 0.0
    %622 = vmatpush1.msra.mxu0 0.0
    %623 = vmatprep.subr.mxu0 0.0
    %624 = vmatpush1.msra.mxu0 0.0
    %625 = vmatprep.subr.mxu0 0.0
    %626 = vmatpush1.msra.mxu0 0.0
    %627 = vmatprep.subr.mxu0 0.0
    %628 = vmatpush1.msra.mxu0 0.0
    %629 = vmatprep.subr.mxu0 0.0
    %630 = vmatpush1.msra.mxu0 0.0
    %631 = vmatprep.subr.mxu0 0.0
    %632 = vmatpush1.msra.mxu0 0.0
    %633 = vmatprep.subr.mxu0 0.0
    %634 = vmatpush1.msra.mxu0 0.0
    %635 = vmatprep.subr.mxu0 0.0
    %636 = vmatpush1.msra.mxu0 0.0
    %637 = vmatprep.subr.mxu0 0.0
    %638 = vmatpush1.msra.mxu0 0.0
    %639 = vmatprep.subr.mxu0 0.0
    %640 = vmatpush1.msra.mxu0 0.0
    %641 = vmatprep.subr.mxu0 0.0
    %642 = vmatpush1.msra.mxu0 0.0
    %643 = vmatprep.subr.mxu0 0.0
    %644 = vmatpush1.msra.mxu0 0.0
    %645 = vmatprep.subr.mxu0 0.0
    %646 = vmatpush1.msra.mxu0 0.0
    %647 = vmatprep.subr.mxu0 0.0
    %648 = vmatpush1.msra.mxu0 0.0
    %649 = vmatprep.subr.mxu0 0.0
    %650 = vmatpush1.msra.mxu0 0.0
    %651 = vmatprep.mubr.f32.mxu0 0.0
    %652 = vmatmul.mubr.f32.gmra.mrb[0].mxu0 %v566
    %v653 = vpop.f32.mrb[0].mxu0
    %v654 = vadd.f32 %v586, %v653
    %v655 = vpop.f32.mrb[0].mxu0
    %656 = vdwg.mxu0
    %v657 = vmax.f32 %v654, 0.0
    %v658 = vld [vmem:[#allocation2 + $0x248] sm:$0xff]
    %v659 = vld [vmem:[#allocation2 + $0x250] sm:$0xff]
    %v660 = vld [vmem:[#allocation2 + $0x258] sm:$0xff]
    %v661 = vld [vmem:[#allocation2 + $0x260] sm:$0xff]
    %v662 = vld [vmem:[#allocation2 + $0x268] sm:$0xff]
    %v663 = vld [vmem:[#allocation2 + $0x270] sm:$0xff]
    %v664 = vld [vmem:[#allocation2 + $0x278] sm:$0xff]
    %v665 = vld [vmem:[#allocation2 + $0x280] sm:$0xff]
    %v666 = vlaneseq
    %v667 = vshrl.u32 %v666, 7
    %v668 = vsub.s32 0, %v667
    %v669 = vrot.slane %v26, %v668
    %v671 = vsel %vm41, %v657, 0
    %673 = vmatprep.subr.mxu0 0.0
    %674 = vmatpush1.msra.mxu0 %v658
    %675 = vmatprep.subr.mxu0 0.0
    %676 = vmatpush1.msra.mxu0 %v659
    %677 = vmatprep.subr.mxu0 0.0
    %678 = vmatpush1.msra.mxu0 %v660
    %679 = vmatprep.subr.mxu0 0.0
    %680 = vmatpush1.msra.mxu0 %v661
    %681 = vmatprep.subr.mxu0 0.0
    %682 = vmatpush1.msra.mxu0 %v662
    %683 = vmatprep.subr.mxu0 0.0
    %684 = vmatpush1.msra.mxu0 %v663
    %685 = vmatprep.subr.mxu0 0.0
    %686 = vmatpush1.msra.mxu0 %v664
    %687 = vmatprep.subr.mxu0 0.0
    %688 = vmatpush1.msra.mxu0 %v665
    %689 = vmatprep.subr.mxu0 0.0
    %690 = vmatpush1.msra.mxu0 0.0
    %691 = vmatprep.subr.mxu0 0.0
    %692 = vmatpush1.msra.mxu0 0.0
    %693 = vmatprep.subr.mxu0 0.0
    %694 = vmatpush1.msra.mxu0 0.0
    %695 = vmatprep.subr.mxu0 0.0
    %696 = vmatpush1.msra.mxu0 0.0
    %697 = vmatprep.subr.mxu0 0.0
    %698 = vmatpush1.msra.mxu0 0.0
    %699 = vmatprep.subr.mxu0 0.0
    %700 = vmatpush1.msra.mxu0 0.0
    %701 = vmatprep.subr.mxu0 0.0
    %702 = vmatpush1.msra.mxu0 0.0
    %703 = vmatprep.subr.mxu0 0.0
    %704 = vmatpush1.msra.mxu0 0.0
    %705 = vmatprep.subr.mxu0 0.0
    %706 = vmatpush1.msra.mxu0 0.0
    %707 = vmatprep.subr.mxu0 0.0
    %708 = vmatpush1.msra.mxu0 0.0
    %709 = vmatprep.subr.mxu0 0.0
    %710 = vmatpush1.msra.mxu0 0.0
    %711 = vmatprep.subr.mxu0 0.0
    %712 = vmatpush1.msra.mxu0 0.0
    %713 = vmatprep.subr.mxu0 0.0
    %714 = vmatpush1.msra.mxu0 0.0
    %715 = vmatprep.subr.mxu0 0.0
    %716 = vmatpush1.msra.mxu0 0.0
    %717 = vmatprep.subr.mxu0 0.0
    %718 = vmatpush1.msra.mxu0 0.0
    %719 = vmatprep.subr.mxu0 0.0
    %720 = vmatpush1.msra.mxu0 0.0
    %721 = vmatprep.subr.mxu0 0.0
    %722 = vmatpush1.msra.mxu0 0.0
    %723 = vmatprep.subr.mxu0 0.0
    %724 = vmatpush1.msra.mxu0 0.0
    %725 = vmatprep.subr.mxu0 0.0
    %726 = vmatpush1.msra.mxu0 0.0
    %727 = vmatprep.subr.mxu0 0.0
    %728 = vmatpush1.msra.mxu0 0.0
    %729 = vmatprep.subr.mxu0 0.0
    %730 = vmatpush1.msra.mxu0 0.0
    %731 = vmatprep.subr.mxu0 0.0
    %732 = vmatpush1.msra.mxu0 0.0
    %733 = vmatprep.subr.mxu0 0.0
    %734 = vmatpush1.msra.mxu0 0.0
    %735 = vmatprep.subr.mxu0 0.0
    %736 = vmatpush1.msra.mxu0 0.0
    %737 = vmatprep.mubr.f32.mxu0 0.0
    %738 = vmatmul.mubr.f32.gmra.mrb[0].mxu0 %v671
    %v739 = vpop.f32.mrb[0].mxu0
    %v740 = vadd.f32 %v669, %v739
    %v741 = vpop.f32.mrb[0].mxu0
    %742 = vdwg.mxu0
    %v743 = vmul.f32 %v740, 0.5
    %v744 = vmul.f32 %v743, 1.442695
    %v745 = vpow.pop %v744
    %747 = vrot.lane.b32.xlu0 %v745, 64
    %v748 = vpop.permute.xlu0 %747
    %v750 = vmul.f32 %v28, %v748
    %752 = vrot.lane.b32.xlu0 %v740, 96
    %v753 = vpop.permute.xlu0 %752
    %v755 = vadd.f32 %v750, %v753
    %v756 = vld [vmem:[#allocation2 + $0x288] sm:$0xff]
    %v757 = vld [vmem:[#allocation2 + $0x290] sm:$0xff]
    %v758 = vld [vmem:[#allocation2 + $0x298] sm:$0xff]
    %v759 = vld [vmem:[#allocation2 + $0x2a0] sm:$0xff]
    %v760 = vlaneseq
    %v761 = vshrl.u32 %v760, 7
    %v762 = vsub.s32 1, %v761
    %v763 = vrot.slane %v26, %v762
    %765 = vrot.lane.b32.xlu0 %v755, 32
    %v766 = vpop.permute.xlu0 %765
    %v767 = vsel %vm235, %v766, 0
    %769 = vmatprep.subr.mxu0 0.0
    %770 = vmatpush1.msra.mxu0 %v756
    %771 = vmatprep.subr.mxu0 0.0
    %772 = vmatpush1.msra.mxu0 %v757
    %773 = vmatprep.subr.mxu0 0.0
    %774 = vmatpush1.msra.mxu0 %v758
    %775 = vmatprep.subr.mxu0 0.0
    %776 = vmatpush1.msra.mxu0 %v759
    %777 = vmatprep.subr.mxu0 0.0
    %778 = vmatpush1.msra.mxu0 0.0
    %779 = vmatprep.subr.mxu0 0.0
    %780 = vmatpush1.msra.mxu0 0.0
    %781 = vmatprep.subr.mxu0 0.0
    %782 = vmatpush1.msra.mxu0 0.0
    %783 = vmatprep.subr.mxu0 0.0
    %784 = vmatpush1.msra.mxu0 0.0
    %785 = vmatprep.subr.mxu0 0.0
    %786 = vmatpush1.msra.mxu0 0.0
    %787 = vmatprep.subr.mxu0 0.0
    %788 = vmatpush1.msra.mxu0 0.0
    %789 = vmatprep.subr.mxu0 0.0
    %790 = vmatpush1.msra.mxu0 0.0
    %791 = vmatprep.subr.mxu0 0.0
    %792 = vmatpush1.msra.mxu0 0.0
    %793 = vmatprep.subr.mxu0 0.0
    %794 = vmatpush1.msra.mxu0 0.0
    %795 = vmatprep.subr.mxu0 0.0
    %796 = vmatpush1.msra.mxu0 0.0
    %797 = vmatprep.subr.mxu0 0.0
    %798 = vmatpush1.msra.mxu0 0.0
    %799 = vmatprep.subr.mxu0 0.0
    %800 = vmatpush1.msra.mxu0 0.0
    %801 = vmatprep.subr.mxu0 0.0
    %802 = vmatpush1.msra.mxu0 0.0
    %803 = vmatprep.subr.mxu0 0.0
    %804 = vmatpush1.msra.mxu0 0.0
    %805 = vmatprep.subr.mxu0 0.0
    %806 = vmatpush1.msra.mxu0 0.0
    %807 = vmatprep.subr.mxu0 0.0
    %808 = vmatpush1.msra.mxu0 0.0
    %809 = vmatprep.subr.mxu0 0.0
    %810 = vmatpush1.msra.mxu0 0.0
    %811 = vmatprep.subr.mxu0 0.0
    %812 = vmatpush1.msra.mxu0 0.0
    %813 = vmatprep.subr.mxu0 0.0
    %814 = vmatpush1.msra.mxu0 0.0
    %815 = vmatprep.subr.mxu0 0.0
    %816 = vmatpush1.msra.mxu0 0.0
    %817 = vmatprep.subr.mxu0 0.0
    %818 = vmatpush1.msra.mxu0 0.0
    %819 = vmatprep.subr.mxu0 0.0
    %820 = vmatpush1.msra.mxu0 0.0
    %821 = vmatprep.subr.mxu0 0.0
    %822 = vmatpush1.msra.mxu0 0.0
    %823 = vmatprep.subr.mxu0 0.0
    %824 = vmatpush1.msra.mxu0 0.0
    %825 = vmatprep.subr.mxu0 0.0
    %826 = vmatpush1.msra.mxu0 0.0
    %827 = vmatprep.subr.mxu0 0.0
    %828 = vmatpush1.msra.mxu0 0.0
    %829 = vmatprep.subr.mxu0 0.0
    %830 = vmatpush1.msra.mxu0 0.0
    %831 = vmatprep.subr.mxu0 0.0
    %832 = vmatpush1.msra.mxu0 0.0
    %833 = vmatprep.mubr.f32.mxu0 0.0
    %834 = vmatmul.mubr.f32.gmra.mrb[0].mxu0 %v767
    %v835 = vpop.f32.mrb[0].mxu0
    %v836 = vadd.f32 %v763, %v835
    %v837 = vpop.f32.mrb[0].mxu0
    %838 = vdwg.mxu0
    %v839 = vmax.f32 %v836, 0.0
    %v840 = vld [vmem:[#allocation2 + $0x2a8] sm:$0xff]
    %v841 = vld [vmem:[#allocation2 + $0x2b0] sm:$0xff]
    %v842 = vld [vmem:[#allocation2 + $0x2b8] sm:$0xff]
    %v843 = vld [vmem:[#allocation2 + $0x2c0] sm:$0xff]
    %v844 = vld [vmem:[#allocation2 + $0x2c8] sm:$0xff]
    %v845 = vld [vmem:[#allocation2 + $0x2d0] sm:$0xff]
    %v846 = vld [vmem:[#allocation2 + $0x2d8] sm:$0xff]
    %v847 = vld [vmem:[#allocation2 + $0x2e0] sm:$0xff]
    %v848 = vlaneseq
    %v849 = vshrl.u32 %v848, 7
    %v850 = vsub.s32 2, %v849
    %v851 = vrot.slane %v26, %v850
    %v853 = vsel %vm41, %v839, 0
    %855 = vmatprep.subr.mxu0 0.0
    %856 = vmatpush1.msra.mxu0 %v840
    %857 = vmatprep.subr.mxu0 0.0
    %858 = vmatpush1.msra.mxu0 %v841
    %859 = vmatprep.subr.mxu0 0.0
    %860 = vmatpush1.msra.mxu0 %v842
    %861 = vmatprep.subr.mxu0 0.0
    %862 = vmatpush1.msra.mxu0 %v843
    %863 = vmatprep.subr.mxu0 0.0
    %864 = vmatpush1.msra.mxu0 %v844
    %865 = vmatprep.subr.mxu0 0.0
    %866 = vmatpush1.msra.mxu0 %v845
    %867 = vmatprep.subr.mxu0 0.0
    %868 = vmatpush1.msra.mxu0 %v846
    %869 = vmatprep.subr.mxu0 0.0
    %870 = vmatpush1.msra.mxu0 %v847
    %871 = vmatprep.subr.mxu0 0.0
    %872 = vmatpush1.msra.mxu0 0.0
    %873 = vmatprep.subr.mxu0 0.0
    %874 = vmatpush1.msra.mxu0 0.0
    %875 = vmatprep.subr.mxu0 0.0
    %876 = vmatpush1.msra.mxu0 0.0
    %877 = vmatprep.subr.mxu0 0.0
    %878 = vmatpush1.msra.mxu0 0.0
    %879 = vmatprep.subr.mxu0 0.0
    %880 = vmatpush1.msra.mxu0 0.0
    %881 = vmatprep.subr.mxu0 0.0
    %882 = vmatpush1.msra.mxu0 0.0
    %883 = vmatprep.subr.mxu0 0.0
    %884 = vmatpush1.msra.mxu0 0.0
    %885 = vmatprep.subr.mxu0 0.0
    %886 = vmatpush1.msra.mxu0 0.0
    %887 = vmatprep.subr.mxu0 0.0
    %888 = vmatpush1.msra.mxu0 0.0
    %889 = vmatprep.subr.mxu0 0.0
    %890 = vmatpush1.msra.mxu0 0.0
    %891 = vmatprep.subr.mxu0 0.0
    %892 = vmatpush1.msra.mxu0 0.0
    %893 = vmatprep.subr.mxu0 0.0
    %894 = vmatpush1.msra.mxu0 0.0
    %895 = vmatprep.subr.mxu0 0.0
    %896 = vmatpush1.msra.mxu0 0.0
    %897 = vmatprep.subr.mxu0 0.0
    %898 = vmatpush1.msra.mxu0 0.0
    %899 = vmatprep.subr.mxu0 0.0
    %900 = vmatpush1.msra.mxu0 0.0
    %901 = vmatprep.subr.mxu0 0.0
    %902 = vmatpush1.msra.mxu0 0.0
    %903 = vmatprep.subr.mxu0 0.0
    %904 = vmatpush1.msra.mxu0 0.0
    %905 = vmatprep.subr.mxu0 0.0
    %906 = vmatpush1.msra.mxu0 0.0
    %907 = vmatprep.subr.mxu0 0.0
    %908 = vmatpush1.msra.mxu0 0.0
    %909 = vmatprep.subr.mxu0 0.0
    %910 = vmatpush1.msra.mxu0 0.0
    %911 = vmatprep.subr.mxu0 0.0
    %912 = vmatpush1.msra.mxu0 0.0
    %913 = vmatprep.subr.mxu0 0.0
    %914 = vmatpush1.msra.mxu0 0.0
    %915 = vmatprep.subr.mxu0 0.0
    %916 = vmatpush1.msra.mxu0 0.0
    %917 = vmatprep.subr.mxu0 0.0
    %918 = vmatpush1.msra.mxu0 0.0
    %919 = vmatprep.mubr.f32.mxu0 0.0
    %920 = vmatmul.mubr.f32.gmra.mrb[0].mxu0 %v853
    %v921 = vpop.f32.mrb[0].mxu0
    %v922 = vadd.f32 %v851, %v921
    %v923 = vpop.f32.mrb[0].mxu0
    %924 = vdwg.mxu0
    %v925 = vmax.f32 %v922, 0.0
    %v926 = vld [vmem:[#allocation2 + $0x2e8] sm:$0xff]
    %v927 = vld [vmem:[#allocation2 + $0x2f0] sm:$0xff]
    %v928 = vld [vmem:[#allocation2 + $0x2f8] sm:$0xff]
    %v929 = vld [vmem:[#allocation2 + $0x300] sm:$0xff]
    %v930 = vld [vmem:[#allocation2 + $0x308] sm:$0xff]
    %v931 = vld [vmem:[#allocation2 + $0x310] sm:$0xff]
    %v932 = vld [vmem:[#allocation2 + $0x318] sm:$0xff]
    %v933 = vld [vmem:[#allocation2 + $0x320] sm:$0xff]
    %v934 = vld [vmem:[#allocation2 + $0x328] sm:$0xff]
    %v935 = vld [vmem:[#allocation2 + $0x330] sm:$0xff]
    %v936 = vld [vmem:[#allocation2 + $0x338] sm:$0xff]
    %v937 = vld [vmem:[#allocation2 + $0x340] sm:$0xff]
    %v938 = vld [vmem:[#allocation2 + $0x348] sm:$0xff]
    %v939 = vld [vmem:[#allocation2 + $0x350] sm:$0xff]
    %v940 = vld [vmem:[#allocation2 + $0x358] sm:$0xff]
    %v941 = vld [vmem:[#allocation2 + $0x360] sm:$0xff]
    %v942 = vlaneseq
    %v943 = vshrl.u32 %v942, 7
    %v944 = vsub.s32 3, %v943
    %v945 = vrot.slane %v26, %v944
    %946 = vmatprep.subr.mxu0 0.0
    %947 = vmatpush1.msra.mxu0 %v926
    %948 = vmatprep.subr.mxu0 0.0
    %949 = vmatpush1.msra.mxu0 %v927
    %950 = vmatprep.subr.mxu0 0.0
    %951 = vmatpush1.msra.mxu0 %v928
    %952 = vmatprep.subr.mxu0 0.0
    %953 = vmatpush1.msra.mxu0 %v929
    %954 = vmatprep.subr.mxu0 0.0
    %955 = vmatpush1.msra.mxu0 %v930
    %956 = vmatprep.subr.mxu0 0.0
    %957 = vmatpush1.msra.mxu0 %v931
    %958 = vmatprep.subr.mxu0 0.0
    %959 = vmatpush1.msra.mxu0 %v932
    %960 = vmatprep.subr.mxu0 0.0
    %961 = vmatpush1.msra.mxu0 %v933
    %962 = vmatprep.subr.mxu0 0.0
    %963 = vmatpush1.msra.mxu0 %v934
    %964 = vmatprep.subr.mxu0 0.0
    %965 = vmatpush1.msra.mxu0 %v935
    %966 = vmatprep.subr.mxu0 0.0
    %967 = vmatpush1.msra.mxu0 %v936
    %968 = vmatprep.subr.mxu0 0.0
    %969 = vmatpush1.msra.mxu0 %v937
    %970 = vmatprep.subr.mxu0 0.0
    %971 = vmatpush1.msra.mxu0 %v938
    %972 = vmatprep.subr.mxu0 0.0
    %973 = vmatpush1.msra.mxu0 %v939
    %974 = vmatprep.subr.mxu0 0.0
    %975 = vmatpush1.msra.mxu0 %v940
    %976 = vmatprep.subr.mxu0 0.0
    %977 = vmatpush1.msra.mxu0 %v941
    %978 = vmatprep.subr.mxu0 0.0
    %979 = vmatpush1.msra.mxu0 0.0
    %980 = vmatprep.subr.mxu0 0.0
    %981 = vmatpush1.msra.mxu0 0.0
    %982 = vmatprep.subr.mxu0 0.0
    %983 = vmatpush1.msra.mxu0 0.0
    %984 = vmatprep.subr.mxu0 0.0
    %985 = vmatpush1.msra.mxu0 0.0
    %986 = vmatprep.subr.mxu0 0.0
    %987 = vmatpush1.msra.mxu0 0.0
    %988 = vmatprep.subr.mxu0 0.0
    %989 = vmatpush1.msra.mxu0 0.0
    %990 = vmatprep.subr.mxu0 0.0
    %991 = vmatpush1.msra.mxu0 0.0
    %992 = vmatprep.subr.mxu0 0.0
    %993 = vmatpush1.msra.mxu0 0.0
    %994 = vmatprep.subr.mxu0 0.0
    %995 = vmatpush1.msra.mxu0 0.0
    %996 = vmatprep.subr.mxu0 0.0
    %997 = vmatpush1.msra.mxu0 0.0
    %998 = vmatprep.subr.mxu0 0.0
    %999 = vmatpush1.msra.mxu0 0.0
    %1000 = vmatprep.subr.mxu0 0.0
    %1001 = vmatpush1.msra.mxu0 0.0
    %1002 = vmatprep.subr.mxu0 0.0
    %1003 = vmatpush1.msra.mxu0 0.0
    %1004 = vmatprep.subr.mxu0 0.0
    %1005 = vmatpush1.msra.mxu0 0.0
    %1006 = vmatprep.subr.mxu0 0.0
    %1007 = vmatpush1.msra.mxu0 0.0
    %1008 = vmatprep.subr.mxu0 0.0
    %1009 = vmatpush1.msra.mxu0 0.0
    %1010 = vmatprep.mubr.f32.mxu0 0.0
    %1011 = vmatmul.mubr.f32.gmra.mrb[0].mxu0 %v925
    %v1012 = vpop.f32.mrb[0].mxu0
    %v1013 = vadd.f32 %v945, %v1012
    %v1014 = vpop.f32.mrb[0].mxu0
    %1015 = vdwg.mxu0
    %v1016 = vmax.f32 %v1013, 0.0
    %v1017 = vld [vmem:[#allocation2 + $0x368] sm:$0xff]
    %v1018 = vld [vmem:[#allocation2 + $0x370] sm:$0xff]
    %v1019 = vld [vmem:[#allocation2 + $0x378] sm:$0xff]
    %v1020 = vld [vmem:[#allocation2 + $0x380] sm:$0xff]
    %v1021 = vld [vmem:[#allocation2 + $0x388] sm:$0xff]
    %v1022 = vld [vmem:[#allocation2 + $0x390] sm:$0xff]
    %v1023 = vld [vmem:[#allocation2 + $0x398] sm:$0xff]
    %v1024 = vld [vmem:[#allocation2 + $0x3a0] sm:$0xff]
    %v1025 = vld [vmem:[#allocation2 + $0x3a8] sm:$0xff]
    %v1026 = vld [vmem:[#allocation2 + $0x3b0] sm:$0xff]
    %v1027 = vld [vmem:[#allocation2 + $0x3b8] sm:$0xff]
    %v1028 = vld [vmem:[#allocation2 + $0x3c0] sm:$0xff]
    %v1029 = vld [vmem:[#allocation2 + $0x3c8] sm:$0xff]
    %v1030 = vld [vmem:[#allocation2 + $0x3d0] sm:$0xff]
    %v1031 = vld [vmem:[#allocation2 + $0x3d8] sm:$0xff]
    %v1032 = vld [vmem:[#allocation2 + $0x3e0] sm:$0xff]
    %v1033 = vlaneseq
    %v1034 = vshrl.u32 %v1033, 7
    %v1035 = vsub.s32 4, %v1034
    %v1036 = vrot.slane %v26, %v1035
    %1037 = vmatprep.subr.mxu0 0.0
    %1038 = vmatpush1.msra.mxu0 %v1017
    %1039 = vmatprep.subr.mxu0 0.0
    %1040 = vmatpush1.msra.mxu0 %v1018
    %1041 = vmatprep.subr.mxu0 0.0
    %1042 = vmatpush1.msra.mxu0 %v1019
    %1043 = vmatprep.subr.mxu0 0.0
    %1044 = vmatpush1.msra.mxu0 %v1020
    %1045 = vmatprep.subr.mxu0 0.0
    %1046 = vmatpush1.msra.mxu0 %v1021
    %1047 = vmatprep.subr.mxu0 0.0
    %1048 = vmatpush1.msra.mxu0 %v1022
    %1049 = vmatprep.subr.mxu0 0.0
    %1050 = vmatpush1.msra.mxu0 %v1023
    %1051 = vmatprep.subr.mxu0 0.0
    %1052 = vmatpush1.msra.mxu0 %v1024
    %1053 = vmatprep.subr.mxu0 0.0
    %1054 = vmatpush1.msra.mxu0 %v1025
    %1055 = vmatprep.subr.mxu0 0.0
    %1056 = vmatpush1.msra.mxu0 %v1026
    %1057 = vmatprep.subr.mxu0 0.0
    %1058 = vmatpush1.msra.mxu0 %v1027
    %1059 = vmatprep.subr.mxu0 0.0
    %1060 = vmatpush1.msra.mxu0 %v1028
    %1061 = vmatprep.subr.mxu0 0.0
    %1062 = vmatpush1.msra.mxu0 %v1029
    %1063 = vmatprep.subr.mxu0 0.0
    %1064 = vmatpush1.msra.mxu0 %v1030
    %1065 = vmatprep.subr.mxu0 0.0
    %1066 = vmatpush1.msra.mxu0 %v1031
    %1067 = vmatprep.subr.mxu0 0.0
    %1068 = vmatpush1.msra.mxu0 %v1032
    %1069 = vmatprep.subr.mxu0 0.0
    %1070 = vmatpush1.msra.mxu0 0.0
    %1071 = vmatprep.subr.mxu0 0.0
    %1072 = vmatpush1.msra.mxu0 0.0
    %1073 = vmatprep.subr.mxu0 0.0
    %1074 = vmatpush1.msra.mxu0 0.0
    %1075 = vmatprep.subr.mxu0 0.0
    %1076 = vmatpush1.msra.mxu0 0.0
    %1077 = vmatprep.subr.mxu0 0.0
    %1078 = vmatpush1.msra.mxu0 0.0
    %1079 = vmatprep.subr.mxu0 0.0
    %1080 = vmatpush1.msra.mxu0 0.0
    %1081 = vmatprep.subr.mxu0 0.0
    %1082 = vmatpush1.msra.mxu0 0.0
    %1083 = vmatprep.subr.mxu0 0.0
    %1084 = vmatpush1.msra.mxu0 0.0
    %1085 = vmatprep.subr.mxu0 0.0
    %1086 = vmatpush1.msra.mxu0 0.0
    %1087 = vmatprep.subr.mxu0 0.0
    %1088 = vmatpush1.msra.mxu0 0.0
    %1089 = vmatprep.subr.mxu0 0.0
    %1090 = vmatpush1.msra.mxu0 0.0
    %1091 = vmatprep.subr.mxu0 0.0
    %1092 = vmatpush1.msra.mxu0 0.0
    %1093 = vmatprep.subr.mxu0 0.0
    %1094 = vmatpush1.msra.mxu0 0.0
    %1095 = vmatprep.subr.mxu0 0.0
    %1096 = vmatpush1.msra.mxu0 0.0
    %1097 = vmatprep.subr.mxu0 0.0
    %1098 = vmatpush1.msra.mxu0 0.0
    %1099 = vmatprep.subr.mxu0 0.0
    %1100 = vmatpush1.msra.mxu0 0.0
    %1101 = vmatprep.mubr.f32.mxu0 0.0
    %1102 = vmatmul.mubr.f32.gmra.mrb[0].mxu0 %v925
    %v1103 = vpop.f32.mrb[0].mxu0
    %v1104 = vadd.f32 %v1036, %v1103
    %v1105 = vpop.f32.mrb[0].mxu0
    %1106 = vdwg.mxu0
    %v1107 = vmax.f32 %v1104, 0.0
    %v1108 = vld [vmem:[#allocation2 + $0x3e8] sm:$0xff]
    %v1109 = vld [vmem:[#allocation2 + $0x3f0] sm:$0xff]
    %v1110 = vld [vmem:[#allocation2 + $0x3f8] sm:$0xff]
    %v1111 = vld [vmem:[#allocation2 + $0x400] sm:$0xff]
    %v1112 = vld [vmem:[#allocation2 + $0x408] sm:$0xff]
    %v1113 = vld [vmem:[#allocation2 + $0x410] sm:$0xff]
    %v1114 = vld [vmem:[#allocation2 + $0x418] sm:$0xff]
    %v1115 = vld [vmem:[#allocation2 + $0x420] sm:$0xff]
    %v1116 = vld [vmem:[#allocation2 + $0x428] sm:$0xff]
    %v1117 = vld [vmem:[#allocation2 + $0x430] sm:$0xff]
    %v1118 = vld [vmem:[#allocation2 + $0x438] sm:$0xff]
    %v1119 = vld [vmem:[#allocation2 + $0x440] sm:$0xff]
    %v1120 = vld [vmem:[#allocation2 + $0x448] sm:$0xff]
    %v1121 = vld [vmem:[#allocation2 + $0x450] sm:$0xff]
    %v1122 = vld [vmem:[#allocation2 + $0x458] sm:$0xff]
    %v1123 = vld [vmem:[#allocation2 + $0x460] sm:$0xff]
    %v1124 = vld [vmem:[#allocation2 + $0x468] sm:$0xff]
    %v1125 = vld [vmem:[#allocation2 + $0x470] sm:$0xff]
    %v1126 = vld [vmem:[#allocation2 + $0x478] sm:$0xff]
    %v1127 = vld [vmem:[#allocation2 + $0x480] sm:$0xff]
    %v1128 = vld [vmem:[#allocation2 + $0x488] sm:$0xff]
    %v1129 = vld [vmem:[#allocation2 + $0x490] sm:$0xff]
    %v1130 = vld [vmem:[#allocation2 + $0x498] sm:$0xff]
    %v1131 = vld [vmem:[#allocation2 + $0x4a0] sm:$0xff]
    %v1132 = vld [vmem:[#allocation2 + $0x4a8] sm:$0xff]
    %v1133 = vld [vmem:[#allocation2 + $0x4b0] sm:$0xff]
    %v1134 = vld [vmem:[#allocation2 + $0x4b8] sm:$0xff]
    %v1135 = vld [vmem:[#allocation2 + $0x4c0] sm:$0xff]
    %v1136 = vld [vmem:[#allocation2 + $0x4c8] sm:$0xff]
    %v1137 = vld [vmem:[#allocation2 + $0x4d0] sm:$0xff]
    %v1138 = vld [vmem:[#allocation2 + $0x4d8] sm:$0xff]
    %v1139 = vld [vmem:[#allocation2 + $0x4e0] sm:$0xff]
    %1140 = vmatprep.subr.mxu0 0.0
    %1141 = vmatpush1.msra.mxu0 %v1124
    %1142 = vmatprep.subr.mxu0 0.0
    %1143 = vmatpush1.msra.mxu0 %v1125
    %1144 = vmatprep.subr.mxu0 0.0
    %1145 = vmatpush1.msra.mxu0 %v1126
    %1146 = vmatprep.subr.mxu0 0.0
    %1147 = vmatpush1.msra.mxu0 %v1127
    %1148 = vmatprep.subr.mxu0 0.0
    %1149 = vmatpush1.msra.mxu0 %v1128
    %1150 = vmatprep.subr.mxu0 0.0
    %1151 = vmatpush1.msra.mxu0 %v1129
    %1152 = vmatprep.subr.mxu0 0.0
    %1153 = vmatpush1.msra.mxu0 %v1130
    %1154 = vmatprep.subr.mxu0 0.0
    %1155 = vmatpush1.msra.mxu0 %v1131
    %1156 = vmatprep.subr.mxu0 0.0
    %1157 = vmatpush1.msra.mxu0 %v1132
    %1158 = vmatprep.subr.mxu0 0.0
    %1159 = vmatpush1.msra.mxu0 %v1133
    %1160 = vmatprep.subr.mxu0 0.0
    %1161 = vmatpush1.msra.mxu0 %v1134
    %1162 = vmatprep.subr.mxu0 0.0
    %1163 = vmatpush1.msra.mxu0 %v1135
    %1164 = vmatprep.subr.mxu0 0.0
    %1165 = vmatpush1.msra.mxu0 %v1136
    %1166 = vmatprep.subr.mxu0 0.0
    %1167 = vmatpush1.msra.mxu0 %v1137
    %1168 = vmatprep.subr.mxu0 0.0
    %1169 = vmatpush1.msra.mxu0 %v1138
    %1170 = vmatprep.subr.mxu0 0.0
    %1171 = vmatpush1.msra.mxu0 %v1139
    %1172 = vmatprep.subr.mxu0 0.0
    %1173 = vmatpush1.msra.mxu0 0.0
    %1174 = vmatprep.subr.mxu0 0.0
    %1175 = vmatpush1.msra.mxu0 0.0
    %1176 = vmatprep.subr.mxu0 0.0
    %1177 = vmatpush1.msra.mxu0 0.0
    %1178 = vmatprep.subr.mxu0 0.0
    %1179 = vmatpush1.msra.mxu0 0.0
    %1180 = vmatprep.subr.mxu0 0.0
    %1181 = vmatpush1.msra.mxu0 0.0
    %1182 = vmatprep.subr.mxu0 0.0
    %1183 = vmatpush1.msra.mxu0 0.0
    %1184 = vmatprep.subr.mxu0 0.0
    %1185 = vmatpush1.msra.mxu0 0.0
    %1186 = vmatprep.subr.mxu0 0.0
    %1187 = vmatpush1.msra.mxu0 0.0
    %1188 = vmatprep.subr.mxu0 0.0
    %1189 = vmatpush1.msra.mxu0 0.0
    %1190 = vmatprep.subr.mxu0 0.0
    %1191 = vmatpush1.msra.mxu0 0.0
    %1192 = vmatprep.subr.mxu0 0.0
    %1193 = vmatpush1.msra.mxu0 0.0
    %1194 = vmatprep.subr.mxu0 0.0
    %1195 = vmatpush1.msra.mxu0 0.0
    %1196 = vmatprep.subr.mxu0 0.0
    %1197 = vmatpush1.msra.mxu0 0.0
    %1198 = vmatprep.subr.mxu0 0.0
    %1199 = vmatpush1.msra.mxu0 0.0
    %1200 = vmatprep.subr.mxu0 0.0
    %1201 = vmatpush1.msra.mxu0 0.0
    %1202 = vmatprep.subr.mxu0 0.0
    %1203 = vmatpush1.msra.mxu0 0.0
    %1204 = vmatprep.mubr.f32.mxu0 0.0
    %1205 = vmatmul.mubr.f32.gmra.mrb[0].mxu0 %v1107
    %v1206 = vpop.f32.mrb[0].mxu0
    %v1207 = vadd.f32 0.0, %v1206
    %v1208 = vpop.f32.mrb[0].mxu0
    %1209 = vdwg.mxu0
    %1210 = vmatprep.subr.mxu0 0.0
    %1211 = vmatpush1.msra.mxu0 %v1108
    %1212 = vmatprep.subr.mxu0 0.0
    %1213 = vmatpush1.msra.mxu0 %v1109
    %1214 = vmatprep.subr.mxu0 0.0
    %1215 = vmatpush1.msra.mxu0 %v1110
    %1216 = vmatprep.subr.mxu0 0.0
    %1217 = vmatpush1.msra.mxu0 %v1111
    %1218 = vmatprep.subr.mxu0 0.0
    %1219 = vmatpush1.msra.mxu0 %v1112
    %1220 = vmatprep.subr.mxu0 0.0
    %1221 = vmatpush1.msra.mxu0 %v1113
    %1222 = vmatprep.subr.mxu0 0.0
    %1223 = vmatpush1.msra.mxu0 %v1114
    %1224 = vmatprep.subr.mxu0 0.0
    %1225 = vmatpush1.msra.mxu0 %v1115
    %1226 = vmatprep.subr.mxu0 0.0
    %1227 = vmatpush1.msra.mxu0 %v1116
    %1228 = vmatprep.subr.mxu0 0.0
    %1229 = vmatpush1.msra.mxu0 %v1117
    %1230 = vmatprep.subr.mxu0 0.0
    %1231 = vmatpush1.msra.mxu0 %v1118
    %1232 = vmatprep.subr.mxu0 0.0
    %1233 = vmatpush1.msra.mxu0 %v1119
    %1234 = vmatprep.subr.mxu0 0.0
    %1235 = vmatpush1.msra.mxu0 %v1120
    %1236 = vmatprep.subr.mxu0 0.0
    %1237 = vmatpush1.msra.mxu0 %v1121
    %1238 = vmatprep.subr.mxu0 0.0
    %1239 = vmatpush1.msra.mxu0 %v1122
    %1240 = vmatprep.subr.mxu0 0.0
    %1241 = vmatpush1.msra.mxu0 %v1123
    %1242 = vmatprep.subr.mxu0 0.0
    %1243 = vmatpush1.msra.mxu0 0.0
    %1244 = vmatprep.subr.mxu0 0.0
    %1245 = vmatpush1.msra.mxu0 0.0
    %1246 = vmatprep.subr.mxu0 0.0
    %1247 = vmatpush1.msra.mxu0 0.0
    %1248 = vmatprep.subr.mxu0 0.0
    %1249 = vmatpush1.msra.mxu0 0.0
    %1250 = vmatprep.subr.mxu0 0.0
    %1251 = vmatpush1.msra.mxu0 0.0
    %1252 = vmatprep.subr.mxu0 0.0
    %1253 = vmatpush1.msra.mxu0 0.0
    %1254 = vmatprep.subr.mxu0 0.0
    %1255 = vmatpush1.msra.mxu0 0.0
    %1256 = vmatprep.subr.mxu0 0.0
    %1257 = vmatpush1.msra.mxu0 0.0
    %1258 = vmatprep.subr.mxu0 0.0
    %1259 = vmatpush1.msra.mxu0 0.0
    %1260 = vmatprep.subr.mxu0 0.0
    %1261 = vmatpush1.msra.mxu0 0.0
    %1262 = vmatprep.subr.mxu0 0.0
    %1263 = vmatpush1.msra.mxu0 0.0
    %1264 = vmatprep.subr.mxu0 0.0
    %1265 = vmatpush1.msra.mxu0 0.0
    %1266 = vmatprep.subr.mxu0 0.0
    %1267 = vmatpush1.msra.mxu0 0.0
    %1268 = vmatprep.subr.mxu0 0.0
    %1269 = vmatpush1.msra.mxu0 0.0
    %1270 = vmatprep.subr.mxu0 0.0
    %1271 = vmatpush1.msra.mxu0 0.0
    %1272 = vmatprep.subr.mxu0 0.0
    %1273 = vmatpush1.msra.mxu0 0.0
    %1274 = vmatprep.mubr.f32.mxu0 0.0
    %1275 = vmatmul.mubr.f32.gmra.mrb[0].mxu0 %v1016
    %v1276 = vpop.f32.mrb[0].mxu0
    %v1277 = vadd.f32 %v1207, %v1276
    %v1278 = vpop.f32.mrb[0].mxu0
    %1279 = vdwg.mxu0
    %v1280 = vlaneseq
    %v1281 = vshrl.u32 %v1280, 7
    %v1282 = vsub.s32 5, %v1281
    %v1283 = vrot.slane %v26, %v1282
    %v1284 = vadd.f32 %v1277, %v1283
    %v1285 = vmax.f32 %v1284, 0.0
    %v1286 = vld [vmem:[#allocation2 + $0x4e8] sm:$0xff]
    %v1287 = vld [vmem:[#allocation2 + $0x4f0] sm:$0xff]
    %v1288 = vld [vmem:[#allocation2 + $0x4f8] sm:$0xff]
    %v1289 = vld [vmem:[#allocation2 + $0x500] sm:$0xff]
    %v1290 = vlaneseq
    %v1291 = vshrl.u32 %v1290, 7
    %v1292 = vsub.s32 7, %v1291
    %v1293 = vrot.slane %v26, %v1292
    %v1295 = vsel %vm235, %v1285, 0
    %1297 = vmatprep.subr.mxu0 0.0
    %1298 = vmatpush1.msra.mxu0 %v1286
    %1299 = vmatprep.subr.mxu0 0.0
    %1300 = vmatpush1.msra.mxu0 %v1287
    %1301 = vmatprep.subr.mxu0 0.0
    %1302 = vmatpush1.msra.mxu0 %v1288
    %1303 = vmatprep.subr.mxu0 0.0
    %1304 = vmatpush1.msra.mxu0 %v1289
    %1305 = vmatprep.subr.mxu0 0.0
    %1306 = vmatpush1.msra.mxu0 0.0
    %1307 = vmatprep.subr.mxu0 0.0
    %1308 = vmatpush1.msra.mxu0 0.0
    %1309 = vmatprep.subr.mxu0 0.0
    %1310 = vmatpush1.msra.mxu0 0.0
    %1311 = vmatprep.subr.mxu0 0.0
    %1312 = vmatpush1.msra.mxu0 0.0
    %1313 = vmatprep.subr.mxu0 0.0
    %1314 = vmatpush1.msra.mxu0 0.0
    %1315 = vmatprep.subr.mxu0 0.0
    %1316 = vmatpush1.msra.mxu0 0.0
    %1317 = vmatprep.subr.mxu0 0.0
    %1318 = vmatpush1.msra.mxu0 0.0
    %1319 = vmatprep.subr.mxu0 0.0
    %1320 = vmatpush1.msra.mxu0 0.0
    %1321 = vmatprep.subr.mxu0 0.0
    %1322 = vmatpush1.msra.mxu0 0.0
    %1323 = vmatprep.subr.mxu0 0.0
    %1324 = vmatpush1.msra.mxu0 0.0
    %1325 = vmatprep.subr.mxu0 0.0
    %1326 = vmatpush1.msra.mxu0 0.0
    %1327 = vmatprep.subr.mxu0 0.0
    %1328 = vmatpush1.msra.mxu0 0.0
    %1329 = vmatprep.subr.mxu0 0.0
    %1330 = vmatpush1.msra.mxu0 0.0
    %1331 = vmatprep.subr.mxu0 0.0
    %1332 = vmatpush1.msra.mxu0 0.0
    %1333 = vmatprep.subr.mxu0 0.0
    %1334 = vmatpush1.msra.mxu0 0.0
    %1335 = vmatprep.subr.mxu0 0.0
    %1336 = vmatpush1.msra.mxu0 0.0
    %1337 = vmatprep.subr.mxu0 0.0
    %1338 = vmatpush1.msra.mxu0 0.0
    %1339 = vmatprep.subr.mxu0 0.0
    %1340 = vmatpush1.msra.mxu0 0.0
    %1341 = vmatprep.subr.mxu0 0.0
    %1342 = vmatpush1.msra.mxu0 0.0
    %1343 = vmatprep.subr.mxu0 0.0
    %1344 = vmatpush1.msra.mxu0 0.0
    %1345 = vmatprep.subr.mxu0 0.0
    %1346 = vmatpush1.msra.mxu0 0.0
    %1347 = vmatprep.subr.mxu0 0.0
    %1348 = vmatpush1.msra.mxu0 0.0
    %1349 = vmatprep.subr.mxu0 0.0
    %1350 = vmatpush1.msra.mxu0 0.0
    %1351 = vmatprep.subr.mxu0 0.0
    %1352 = vmatpush1.msra.mxu0 0.0
    %1353 = vmatprep.subr.mxu0 0.0
    %1354 = vmatpush1.msra.mxu0 0.0
    %1355 = vmatprep.subr.mxu0 0.0
    %1356 = vmatpush1.msra.mxu0 0.0
    %1357 = vmatprep.subr.mxu0 0.0
    %1358 = vmatpush1.msra.mxu0 0.0
    %1359 = vmatprep.subr.mxu0 0.0
    %1360 = vmatpush1.msra.mxu0 0.0
    %1361 = vmatprep.mubr.f32.mxu0 0.0
    %1362 = vmatmul.mubr.f32.gmra.mrb[0].mxu0 %v1295
    %v1363 = vpop.f32.mrb[0].mxu0
    %v1364 = vadd.f32 %v1293, %v1363
    %v1365 = vpop.f32.mrb[0].mxu0
    %1366 = vdwg.mxu0
    %v1367 = vmax.f32 %v1364, 0.0
    %v1368 = vld [vmem:[#allocation2 + $0x508] sm:$0xff]
    %v1369 = vld [vmem:[#allocation2 + $0x510] sm:$0xff]
    %v1370 = vld [vmem:[#allocation2 + $0x518] sm:$0xff]
    %v1371 = vld [vmem:[#allocation2 + $0x520] sm:$0xff]
    %v1372 = vld [vmem:[#allocation2 + $0x528] sm:$0xff]
    %v1373 = vld [vmem:[#allocation2 + $0x530] sm:$0xff]
    %v1374 = vld [vmem:[#allocation2 + $0x538] sm:$0xff]
    %v1375 = vld [vmem:[#allocation2 + $0x540] sm:$0xff]
    %v1376 = vld [vmem:[#allocation2 + $0x548] sm:$0xff]
    %v1377 = vlaneseq
    %v1378 = vshrl.u32 %v1377, 7
    %v1379 = vsub.s32 0, %v1378
    %v1380 = vrot.slane %v27, %v1379
    %vm1381 = vcmask 588800
    %v1383 = vsel %vm1381, %v1367, 0
    %1385 = vmatprep.subr.mxu0 0.0
    %1386 = vmatpush1.msra.mxu0 %v1368
    %1387 = vmatprep.subr.mxu0 0.0
    %1388 = vmatpush1.msra.mxu0 %v1369
    %1389 = vmatprep.subr.mxu0 0.0
    %1390 = vmatpush1.msra.mxu0 %v1370
    %1391 = vmatprep.subr.mxu0 0.0
    %1392 = vmatpush1.msra.mxu0 %v1371
    %1393 = vmatprep.subr.mxu0 0.0
    %1394 = vmatpush1.msra.mxu0 %v1372
    %1395 = vmatprep.subr.mxu0 0.0
    %1396 = vmatpush1.msra.mxu0 %v1373
    %1397 = vmatprep.subr.mxu0 0.0
    %1398 = vmatpush1.msra.mxu0 %v1374
    %1399 = vmatprep.subr.mxu0 0.0
    %1400 = vmatpush1.msra.mxu0 %v1375
    %1401 = vmatprep.subr.mxu0 0.0
    %1402 = vmatpush1.msra.mxu0 %v1376
    %1403 = vmatprep.subr.mxu0 0.0
    %1404 = vmatpush1.msra.mxu0 0.0
    %1405 = vmatprep.subr.mxu0 0.0
    %1406 = vmatpush1.msra.mxu0 0.0
    %1407 = vmatprep.subr.mxu0 0.0
    %1408 = vmatpush1.msra.mxu0 0.0
    %1409 = vmatprep.subr.mxu0 0.0
    %1410 = vmatpush1.msra.mxu0 0.0
    %1411 = vmatprep.subr.mxu0 0.0
    %1412 = vmatpush1.msra.mxu0 0.0
    %1413 = vmatprep.subr.mxu0 0.0
    %1414 = vmatpush1.msra.mxu0 0.0
    %1415 = vmatprep.subr.mxu0 0.0
    %1416 = vmatpush1.msra.mxu0 0.0
    %1417 = vmatprep.subr.mxu0 0.0
    %1418 = vmatpush1.msra.mxu0 0.0
    %1419 = vmatprep.subr.mxu0 0.0
    %1420 = vmatpush1.msra.mxu0 0.0
    %1421 = vmatprep.subr.mxu0 0.0
    %1422 = vmatpush1.msra.mxu0 0.0
    %1423 = vmatprep.subr.mxu0 0.0
    %1424 = vmatpush1.msra.mxu0 0.0
    %1425 = vmatprep.subr.mxu0 0.0
    %1426 = vmatpush1.msra.mxu0 0.0
    %1427 = vmatprep.subr.mxu0 0.0
    %1428 = vmatpush1.msra.mxu0 0.0
    %1429 = vmatprep.subr.mxu0 0.0
    %1430 = vmatpush1.msra.mxu0 0.0
    %1431 = vmatprep.subr.mxu0 0.0
    %1432 = vmatpush1.msra.mxu0 0.0
    %1433 = vmatprep.subr.mxu0 0.0
    %1434 = vmatpush1.msra.mxu0 0.0
    %1435 = vmatprep.subr.mxu0 0.0
    %1436 = vmatpush1.msra.mxu0 0.0
    %1437 = vmatprep.subr.mxu0 0.0
    %1438 = vmatpush1.msra.mxu0 0.0
    %1439 = vmatprep.subr.mxu0 0.0
    %1440 = vmatpush1.msra.mxu0 0.0
    %1441 = vmatprep.subr.mxu0 0.0
    %1442 = vmatpush1.msra.mxu0 0.0
    %1443 = vmatprep.subr.mxu0 0.0
    %1444 = vmatpush1.msra.mxu0 0.0
    %1445 = vmatprep.subr.mxu0 0.0
    %1446 = vmatpush1.msra.mxu0 0.0
    %1447 = vmatprep.subr.mxu0 0.0
    %1448 = vmatpush1.msra.mxu0 0.0
    %1449 = vmatprep.mubr.f32.mxu0 0.0
    %1450 = vmatmul.mubr.f32.gmra.mrb[0].mxu0 %v1383
    %v1451 = vpop.f32.mrb[0].mxu0
    %v1452 = vadd.f32 %v1380, %v1451
    %v1453 = vpop.f32.mrb[0].mxu0
    %1454 = vdwg.mxu0
    %v1455 = vmax.f32 %v1452, 0.0
    %v1456 = vsel %vm1381, %v1455, 0.0
    %1457 = vst [vmem:[%s2] sm:$0xff] %v1456
    %v1458 = vsel %vm41, %v740, 0.0
    %1459 = vst [vmem:[%s2 + $0x8] sm:$0xff] %v1458
    // Predicated region
    $region14: #{vae_forward.1} parent=1 // pred_check
      _
    $region15: #{vae_forward.1} parent=1 // pred_check_branch
      %1461 = sbr.rel (0) target = $region17
    $region16: #{vae_forward.1} parent=1 // pred_region
      _
    $region17: #{vae_forward.1} parent=1 // pred_fallthru
      _
    // Predicated region
    $region18: #{vae_forward.1} parent=1 // pred_check
      _
    $region19: #{vae_forward.1} parent=1 // pred_check_branch
      %1463 = sbr.rel (0) target = $region21
    $region20: #{vae_forward.1} parent=1 // pred_region
      _
    $region21: #{vae_forward.1} parent=1 // pred_fallthru
      _
    %1464 = vsyncpa [#allocation3], 1

</llo_original>
